<compile_context>
chip_gen: v6e
topology: v6e:2x2x1
jax: 0.10.0
libtpu: 0.0.40
codegen_flags: <defaults>
</compile_context>

<pallas_src>
import functools
import math

import jax
import jax.numpy as jnp
from jax.experimental import pallas as pl
from jax.experimental.pallas import tpu as pltpu


_LN_EPS = 1e-12


def _round_up(x, m):
    return (x + m - 1) // m * m


def _gelu(x, approx):
    if approx:
        # tanh form -> EUP slot (VALU stays free for the MXU result path)
        return jax.nn.gelu(x, approximate=True)
    # exact BERT gelu: x * 0.5 * (1 + erf(x / sqrt(2)))  (VPU polynomial)
    return 0.5 * x * (1.0 + jax.lax.erf(x * (1.0 / math.sqrt(2.0))))


# ------------------------- fused FFN Pallas kernel ---------------------------
#   per (row tile i, I-chunk k):
#     h   = gelu(x_i @ Wi[:, k] + b_i[k])          (f32)
#     acc += h @ Wo[k, :]                           (f32 accumulator)
#   at k == last:
#     out = LayerNorm(acc + b_o + residual_i)

def _ffn_fused_kernel(x_ref, wi_ref, bi_ref, wo_ref, bo_ref, res_ref,
                      g_ref, beta_ref, o_ref, acc_ref, *,
                      eps, gelu_approx, mm_dtype):
    k = pl.program_id(1)

    @pl.when(k == 0)
    def _():
        acc_ref[...] = jnp.zeros_like(acc_ref)

    # GEMM 1 chunk: (tm, H) @ (H, ti) -> f32 (MXU), bias + gelu in f32
    h = jnp.dot(x_ref[...], wi_ref[...], preferred_element_type=jnp.float32)
    h = _gelu(h + bi_ref[...], gelu_approx)

    # GEMM 2 chunk: (tm, ti) @ (ti, H), accumulated in f32 VMEM scratch
    acc_ref[...] += jnp.dot(h.astype(mm_dtype), wo_ref[...],
                            preferred_element_type=jnp.float32)

    @pl.when(k == pl.num_programs(1) - 1)
    def _():
        y = acc_ref[...] + bo_ref[...] + res_ref[...].astype(jnp.float32)
        # single-pass LayerNorm: E[x], E[x^2]; clamp variance; EUP rsqrt
        inv_h = 1.0 / y.shape[-1]
        s = jnp.sum(y, axis=-1, keepdims=True)
        ss = jnp.sum(y * y, axis=-1, keepdims=True)
        mean = s * inv_h
        var = jnp.maximum(ss * inv_h - mean * mean, 0.0)
        inv_std = jax.lax.rsqrt(var + eps)
        out = (y - mean) * inv_std * g_ref[...] + beta_ref[...]
        o_ref[...] = out.astype(o_ref.dtype)


def ffn_tucker_block(x2d, wi_t, b_i, wo_t, b_o, gamma, beta, *,
                     eps=_LN_EPS, mm_dtype=jnp.bfloat16, gelu_approx=True,
                     tile_m=256, tile_i=1024):
    """Fused tucker-FFN block.

    x2d : (N, H) rows (residual input, also the first GEMM input)
    wi_t: (H, I) intermediate weight, already transposed & in mm_dtype
    wo_t: (I, H) output weight, already transposed & in mm_dtype
    b_i : (I,);  b_o, gamma, beta : (H,)
    Returns (N, H) in x2d.dtype."""
    N, H = x2d.shape
    I = wi_t.shape[1]
    out_dtype = x2d.dtype

    row_align = 16 if jnp.dtype(mm_dtype) == jnp.dtype(jnp.bfloat16) else 8
    ti = min(tile_i, _round_up(I, 128))
    Ip = _round_up(I, ti)
    # >= 2 row blocks when N is large enough -> v7x megacore engages on the
    # "parallel" row axis; rows padded to sublane packing of mm_dtype.
    if N <= row_align:
        tm = _round_up(N, row_align)
    else:
        tm = min(tile_m, _round_up(-(-N // 2), row_align))
    Np = _round_up(N, tm)
    nm, ni = Np // tm, Ip // ti

    # residual stays in the original dtype; matmul operands in mm_dtype
    x_res = jnp.pad(x2d, ((0, Np - N), (0, 0))) if Np != N else x2d
    x_mm = x_res.astype(mm_dtype)
    wi_p = jnp.pad(wi_t, ((0, 0), (0, Ip - I))) if Ip != I else wi_t
    wo_p = jnp.pad(wo_t, ((0, Ip - I), (0, 0))) if Ip != I else wo_t
    bi_p = jnp.pad(b_i, (0, Ip - I)) if Ip != I else b_i
    bi_2d = bi_p.reshape(1, Ip).astype(jnp.float32)
    bo_2d = b_o.reshape(1, H).astype(jnp.float32)
    g_2d = gamma.reshape(1, H).astype(jnp.float32)
    beta_2d = beta.reshape(1, H).astype(jnp.float32)

    mm_b = jnp.dtype(mm_dtype).itemsize
    res_b = jnp.dtype(x2d.dtype).itemsize
    out_b = jnp.dtype(out_dtype).itemsize

    # explicit VMEM budget: double-buffered tiles + f32 accumulator (+headroom)
    footprint = (2 * (tm * H * mm_b            # x tile
                      + H * ti * mm_b          # Wi chunk
                      + ti * H * mm_b          # Wo chunk
                      + ti * 4 + 3 * H * 4     # biases / gamma / beta
                      + tm * H * res_b         # residual tile
                      + tm * H * out_b)        # output tile
                 + tm * H * 4)                 # accumulator scratch
    vmem_limit = min(48 << 20, max(32 << 20, int(footprint * 1.5) + (4 << 20)))

    cost = pl.CostEstimate(
        flops=4 * Np * H * Ip + 10 * Np * H,
        transcendentals=Np * Ip + Np,
        bytes_accessed=(Np * H * (mm_b + res_b + out_b)
                        + nm * 2 * Ip * H * mm_b
                        + Ip * 4 + 3 * H * 4),
    )

    kernel = functools.partial(_ffn_fused_kernel, eps=eps,
                               gelu_approx=gelu_approx, mm_dtype=mm_dtype)

    out = pl.pallas_call(
        kernel,
        out_shape=jax.ShapeDtypeStruct((Np, H), out_dtype),
        grid_spec=pltpu.PrefetchScalarGridSpec(
            num_scalar_prefetch=0,
            grid=(nm, ni),                                      # reduction last
            in_specs=[
                pl.BlockSpec((tm, H), lambda i, k: (i, 0)),     # x tile (resident over k)
                pl.BlockSpec((H, ti), lambda i, k: (0, k)),     # Wi chunk (streamed)
                pl.BlockSpec((1, ti), lambda i, k: (0, k)),     # b_i chunk
                pl.BlockSpec((ti, H), lambda i, k: (k, 0)),     # Wo chunk (streamed)
                pl.BlockSpec((1, H), lambda i, k: (0, 0)),      # b_o
                pl.BlockSpec((tm, H), lambda i, k: (i, 0)),     # residual tile
                pl.BlockSpec((1, H), lambda i, k: (0, 0)),      # gamma
                pl.BlockSpec((1, H), lambda i, k: (0, 0)),      # beta
            ],
            out_specs=pl.BlockSpec((tm, H), lambda i, k: (i, 0)),
            scratch_shapes=[pltpu.VMEM((tm, H), jnp.float32)],  # f32 accumulator
        ),
        compiler_params=pltpu.CompilerParams(
            dimension_semantics=("parallel", "arbitrary"),
            vmem_limit_bytes=vmem_limit,
        ),
        cost_estimate=cost,
    )(x_mm, wi_p, bi_2d, wo_p, bo_2d, x_res, g_2d, beta_2d)

    return out[:N]


# --------------------------- plain-JAX pieces --------------------------------

def _layer_norm(x, gamma, beta, eps=_LN_EPS):
    mu = jnp.mean(x, axis=-1, keepdims=True)
    var = jnp.mean(jnp.square(x - mu), axis=-1, keepdims=True)
    return (x - mu) * jax.lax.rsqrt(var + eps) * gamma + beta


# TODO(synk): BertAttention stays in plain JAX (standard dense softmax
# attention); a Pallas flash-attention kernel is orthogonal to the tucker-FFN
# kernel this module is about. Dropout layers are identity (inference).
def bert_attention(x, attn_mask, p, num_heads, eps=_LN_EPS):
    B, S, H = x.shape
    hd = H // num_heads

    def heads(t):
        return t.reshape(B, S, num_heads, hd).transpose(0, 2, 1, 3)

    q = heads(x @ p["wq"].T + p["bq"])
    k = heads(x @ p["wk"].T + p["bk"])
    v = heads(x @ p["wv"].T + p["bv"])
    scores = jnp.einsum("bhqd,bhkd->bhqk", q, k) / math.sqrt(hd)
    if attn_mask is not None:
        scores = scores + attn_mask
    probs = jax.nn.softmax(scores, axis=-1)
    ctx = jnp.einsum("bhqk,bhkd->bhqd", probs, v)
    ctx = ctx.transpose(0, 2, 1, 3).reshape(B, S, H)
    out = ctx @ p["wo"].T + p["bo"]
    return _layer_norm(out + x, p["ln_g"], p["ln_b"], eps)


def _tucker_reconstruct_T(core, a, b, c):
    # tl.tenalg.multi_mode_dot(core, [a, b, c])[l, m, n]
    #   = sum_{p,q,r} core[p,q,r] a[l,p] b[m,q] c[n,r]
    # We emit the TRANSPOSED per-layer matrices directly ("lnm" output order):
    # result_T[l] == multi_mode_dot(...)[l].T  — exactly the layout the fused
    # kernel consumes, so no per-layer transpose copies are needed.
    return jnp.einsum("pqr,lp,mq,nr->lnm", core, a, b, c)


def bert_encoder_ffn_tucker_forward(params, hidden_states, attention_mask,
                                    num_heads, output_all_encoded_layers=True,
                                    use_bf16=True, gelu_approx=True,
                                    use_pallas=True):
    mm_dtype = jnp.bfloat16 if use_bf16 else hidden_states.dtype

    # (L, H, I) == tensor_i[l].T  (Wi^T);  (L, I, H) == tensor_o[l].T  (Wo^T)
    wi_t_all = _tucker_reconstruct_T(params["core_i"], params["a_i"],
                                     params["b_i"], params["c_i"])
    wo_t_all = _tucker_reconstruct_T(params["core_o"], params["a_o"],
                                     params["b_o"], params["c_o"])
    if use_pallas:
        # cast once for ALL layers (no per-layer cast/transpose copies)
        wi_t_all = wi_t_all.astype(mm_dtype)
        wo_t_all = wo_t_all.astype(mm_dtype)

    all_layers = []
    hs = hidden_states
    for l, lp in enumerate(params["layers"]):
        attn = bert_attention(hs, attention_mask, lp["attention"], num_heads)
        B, S, H = attn.shape
        x2d = attn.reshape(-1, H)
        if use_pallas:
            y2d = ffn_tucker_block(x2d, wi_t_all[l], lp["b_i"], wo_t_all[l],
                                   lp["b_o"], lp["ln_g"], lp["ln_b"],
                                   mm_dtype=mm_dtype, gelu_approx=gelu_approx)
        else:  # pure-JAX f32 reference FFN (same math, unfused)
            h = _gelu(x2d @ wi_t_all[l] + lp["b_i"], gelu_approx)
            y2d = _layer_norm(h @ wo_t_all[l] + lp["b_o"] + x2d,
                              lp["ln_g"], lp["ln_b"])
        hs = y2d.reshape(B, S, H)
        if output_all_encoded_layers:
            all_layers.append(hs)
    if not output_all_encoded_layers:
        all_layers.append(hs)
    return all_layers


if __name__ == "__main__":
    batch, seq = 2, 8
    hidden, intermediate = 128, 512          # lane-aligned small shapes
    num_layers, num_heads = 2, 2
    rank_fst, rank_snd = 4, 16

    key = jax.random.PRNGKey(0)

    def nrm(k, shape, scale=1.0):
        return scale * jax.random.normal(k, shape, dtype=jnp.float32)

    keys = jax.random.split(key, 9 + num_layers)
    params = {
        "core_i": nrm(keys[0], (rank_fst, 4 * rank_snd, rank_snd), 0.5),
        "a_i": nrm(keys[1], (num_layers, rank_fst), 0.1),
        "b_i": nrm(keys[2], (intermediate, 4 * rank_snd), 0.1),
        "c_i": nrm(keys[3], (hidden, rank_snd), 0.1),
        "core_o": nrm(keys[4], (rank_fst, rank_snd, 4 * rank_snd), 0.5),
        "a_o": nrm(keys[5], (num_layers, rank_fst), 0.1),
        "b_o": nrm(keys[6], (hidden, rank_snd), 0.1),
        "c_o": nrm(keys[7], (intermediate, 4 * rank_snd), 0.1),
        "layers": [],
    }
    for l in range(num_layers):
        lk = jax.random.split(keys[9 + l], 14)
        attn = {
            "wq": nrm(lk[0], (hidden, hidden), 0.02), "bq": nrm(lk[1], (hidden,), 0.02),
            "wk": nrm(lk[2], (hidden, hidden), 0.02), "bk": nrm(lk[3], (hidden,), 0.02),
            "wv": nrm(lk[4], (hidden, hidden), 0.02), "bv": nrm(lk[5], (hidden,), 0.02),
            "wo": nrm(lk[6], (hidden, hidden), 0.02), "bo": nrm(lk[7], (hidden,), 0.02),
            "ln_g": 1.0 + nrm(lk[8], (hidden,), 0.1),
            "ln_b": nrm(lk[9], (hidden,), 0.02),
        }
        params["layers"].append({
            "attention": attn,
            "b_i": nrm(lk[10], (intermediate,), 0.02),
            "b_o": nrm(lk[11], (hidden,), 0.02),
            "ln_g": 1.0 + nrm(lk[12], (hidden,), 0.1),
            "ln_b": nrm(lk[13], (hidden,), 0.02),
        })

    x = nrm(keys[8], (batch, seq, hidden), 1.0)
    # standard BERT extended additive mask (B, 1, 1, S); mask last 2 tokens of seq 1
    mask = jnp.ones((batch, seq), dtype=jnp.float32).at[1, -2:].set(0.0)
    ext_mask = (1.0 - mask)[:, None, None, :] * -10000.0

    # ---- exact parity path: f32 operands + exact erf gelu, tight tolerance ----
    fwd_f32 = jax.jit(functools.partial(
        bert_encoder_ffn_tucker_forward, num_heads=num_heads,
        output_all_encoded_layers=True, use_bf16=False, gelu_approx=False,
        use_pallas=True))
    outs = jax.block_until_ready(fwd_f32(params, x, ext_mask))

    ref_outs = bert_encoder_ffn_tucker_forward(
        params, x, ext_mask, num_heads=num_heads,
        output_all_encoded_layers=True, use_bf16=False, gelu_approx=False,
        use_pallas=False)

    assert len(outs) == num_layers
    for o, r in zip(outs, ref_outs):
        assert o.shape == (batch, seq, hidden)
        err = float(jnp.max(jnp.abs(o - r)))
        assert err < 3e-4, err

    # ---- default fast path: bf16 MXU operands + tanh gelu (EUP), loose tol ----
    fwd_fast = jax.jit(functools.partial(
        bert_encoder_ffn_tucker_forward, num_heads=num_heads,
        output_all_encoded_layers=False, use_bf16=True, gelu_approx=True,
        use_pallas=True))
    outs_fast = jax.block_until_ready(fwd_fast(params, x, ext_mask))
    err_fast = float(jnp.max(jnp.abs(outs_fast[-1] - ref_outs[-1])))
    assert err_fast < 0.25, err_fast

    print("KERNEL_OK")
</pallas_src>

<mosaic_0001>
module attributes {stable_mosaic.version = 11 : i64} {
  func.func @_ffn_fused_kernel(%arg0: i32, %arg1: i32, %arg2: memref<8x128xf32, #tpu.memory_space<vmem>>, %arg3: memref<128x512xf32, #tpu.memory_space<vmem>>, %arg4: memref<1x512xf32, #tpu.memory_space<vmem>>, %arg5: memref<512x128xf32, #tpu.memory_space<vmem>>, %arg6: memref<1x128xf32, #tpu.memory_space<vmem>>, %arg7: memref<8x128xf32, #tpu.memory_space<vmem>>, %arg8: memref<1x128xf32, #tpu.memory_space<vmem>>, %arg9: memref<1x128xf32, #tpu.memory_space<vmem>>, %arg10: memref<8x128xf32, #tpu.memory_space<vmem>>, %arg11: memref<8x128xf32, #tpu.memory_space<vmem>>) attributes {dimension_semantics = [#tpu.dimension_semantics<parallel>, #tpu.dimension_semantics<arbitrary>], iteration_bounds = array<i64: 2, 1>, scalar_prefetch = 0 : i64, scratch_operands = 1 : i64, tpu.core_type = #tpu.core_type<tc>, window_params = [{transform_indices = @transform_0, window_bounds = array<i64: 8, 128>}, {transform_indices = @transform_1, window_bounds = array<i64: 128, 512>}, {transform_indices = @transform_2, window_bounds = array<i64: 1, 512>}, {transform_indices = @transform_3, window_bounds = array<i64: 512, 128>}, {pipeline_mode = #tpu.pipeline_mode<synchronous>, transform_indices = @transform_4, window_bounds = array<i64: 1, 128>}, {transform_indices = @transform_5, window_bounds = array<i64: 8, 128>}, {pipeline_mode = #tpu.pipeline_mode<synchronous>, transform_indices = @transform_6, window_bounds = array<i64: 1, 128>}, {pipeline_mode = #tpu.pipeline_mode<synchronous>, transform_indices = @transform_7, window_bounds = array<i64: 1, 128>}, {transform_indices = @transform_8, window_bounds = array<i64: 8, 128>}]} {
    %c0_i32 = arith.constant 0 : i32
    %0 = arith.cmpi eq, %arg1, %c0_i32 : i32
    %1 = arith.extui %0 : i1 to i32
    %c0_i32_0 = arith.constant 0 : i32
    %2 = arith.cmpi ne, %1, %c0_i32_0 : i32
    scf.if %2 {
      %cst_18 = arith.constant 0.000000e+00 : f32
      %25 = vector.broadcast %cst_18 : f32 to vector<8x128xf32>
      %c0_19 = arith.constant 0 : index
      %c0_20 = arith.constant 0 : index
      %26 = vector.load %arg11[%c0_19, %c0_20] : memref<8x128xf32, #tpu.memory_space<vmem>>, vector<8x128xf32>
      tpu.vector_store %arg11[%c0_19, %c0_20], %25 {strides = array<i32>} : memref<8x128xf32, #tpu.memory_space<vmem>>, vector<8x128xf32>,
    } else {
    }
    %c0 = arith.constant 0 : index
    %c0_1 = arith.constant 0 : index
    %3 = vector.load %arg2[%c0, %c0_1] : memref<8x128xf32, #tpu.memory_space<vmem>>, vector<8x128xf32>
    %c0_2 = arith.constant 0 : index
    %c0_3 = arith.constant 0 : index
    %4 = vector.load %arg3[%c0_2, %c0_3] : memref<128x512xf32, #tpu.memory_space<vmem>>, vector<128x512xf32>
    %cst = arith.constant dense<0.000000e+00> : vector<8x512xf32>
    %5 = tpu.matmul %3, %4, %cst {dimension_numbers = #tpu.dot_dimension_numbers<[1], [0], [0], [1], [0, 0, 1, 1], [], []>} : vector<8x128xf32>, vector<128x512xf32>, vector<8x512xf32> -> vector<8x512xf32>
    %c0_4 = arith.constant 0 : index
    %c0_5 = arith.constant 0 : index
    %6 = vector.load %arg4[%c0_4, %c0_5] : memref<1x512xf32, #tpu.memory_space<vmem>>, vector<1x512xf32>
    %7 = vector.broadcast %6 : vector<1x512xf32> to vector<8x512xf32>
    %8 = arith.addf %5, %7 : vector<8x512xf32>
    %cst_6 = arith.constant 5.000000e-01 : f32
    %9 = vector.broadcast %cst_6 : f32 to vector<8x512xf32>
    %10 = arith.mulf %9, %8 : vector<8x512xf32>
    %cst_7 = arith.constant 0.707106769 : f32
    %11 = vector.broadcast %cst_7 : f32 to vector<8x512xf32>
    %12 = arith.mulf %8, %11 : vector<8x512xf32>
    %13 = math.erf %12 : vector<8x512xf32>
    %cst_8 = arith.constant 1.000000e+00 : f32
    %14 = vector.broadcast %cst_8 : f32 to vector<8x512xf32>
    %15 = arith.addf %14, %13 : vector<8x512xf32>
    %16 = arith.mulf %10, %15 : vector<8x512xf32>
    %c0_9 = arith.constant 0 : index
    %c0_10 = arith.constant 0 : index
    %17 = vector.load %arg11[%c0_9, %c0_10] : memref<8x128xf32, #tpu.memory_space<vmem>>, vector<8x128xf32>
    %c0_11 = arith.constant 0 : index
    %c0_12 = arith.constant 0 : index
    %18 = vector.load %arg5[%c0_11, %c0_12] : memref<512x128xf32, #tpu.memory_space<vmem>>, vector<512x128xf32>
    %cst_13 = arith.constant dense<0.000000e+00> : vector<8x128xf32>
    %19 = tpu.matmul %16, %18, %cst_13 {dimension_numbers = #tpu.dot_dimension_numbers<[1], [0], [0], [1], [0, 0, 1, 1], [], []>} : vector<8x512xf32>, vector<512x128xf32>, vector<8x128xf32> -> vector<8x128xf32>
    %20 = arith.addf %17, %19 : vector<8x128xf32>
    %c0_14 = arith.constant 0 : index
    %c0_15 = arith.constant 0 : index
    %21 = vector.load %arg11[%c0_14, %c0_15] : memref<8x128xf32, #tpu.memory_space<vmem>>, vector<8x128xf32>
    tpu.vector_store %arg11[%c0_14, %c0_15], %20 {strides = array<i32>} : memref<8x128xf32, #tpu.memory_space<vmem>>, vector<8x128xf32>,
    %c0_i32_16 = arith.constant 0 : i32
    %22 = arith.cmpi eq, %arg1, %c0_i32_16 : i32
    %23 = arith.extui %22 : i1 to i32
    %c0_i32_17 = arith.constant 0 : i32
    %24 = arith.cmpi ne, %23, %c0_i32_17 : i32
    scf.if %24 {
      %c0_18 = arith.constant 0 : index
      %c0_19 = arith.constant 0 : index
      %25 = vector.load %arg11[%c0_18, %c0_19] : memref<8x128xf32, #tpu.memory_space<vmem>>, vector<8x128xf32>
      %c0_20 = arith.constant 0 : index
      %c0_21 = arith.constant 0 : index
      %26 = vector.load %arg6[%c0_20, %c0_21] : memref<1x128xf32, #tpu.memory_space<vmem>>, vector<1x128xf32>
      %27 = vector.broadcast %26 : vector<1x128xf32> to vector<8x128xf32>
      %28 = arith.addf %25, %27 : vector<8x128xf32>
      %c0_22 = arith.constant 0 : index
      %c0_23 = arith.constant 0 : index
      %29 = vector.load %arg7[%c0_22, %c0_23] : memref<8x128xf32, #tpu.memory_space<vmem>>, vector<8x128xf32>
      %30 = arith.addf %28, %29 : vector<8x128xf32>
      %cst_24 = arith.constant dense<0.000000e+00> : vector<8xf32>
      %31 = vector.multi_reduction <add>, %30, %cst_24 [1] : vector<8x128xf32> to vector<8xf32>
      %32 = vector.shape_cast %31 : vector<8xf32> to vector<8x1xf32>
      %33 = arith.mulf %30, %30 : vector<8x128xf32>
      %cst_25 = arith.constant dense<0.000000e+00> : vector<8xf32>
      %34 = vector.multi_reduction <add>, %33, %cst_25 [1] : vector<8x128xf32> to vector<8xf32>
      %35 = vector.shape_cast %34 : vector<8xf32> to vector<8x1xf32>
      %cst_26 = arith.constant 7.812500e-03 : f32
      %36 = vector.broadcast %cst_26 : f32 to vector<8x1xf32>
      %37 = arith.mulf %32, %36 : vector<8x1xf32>
      %cst_27 = arith.constant 7.812500e-03 : f32
      %38 = vector.broadcast %cst_27 : f32 to vector<8x1xf32>
      %39 = arith.mulf %35, %38 : vector<8x1xf32>
      %40 = arith.mulf %37, %37 : vector<8x1xf32>
      %41 = arith.subf %39, %40 : vector<8x1xf32>
      %cst_28 = arith.constant 0.000000e+00 : f32
      %42 = vector.broadcast %cst_28 : f32 to vector<8x1xf32>
      %43 = arith.maximumf %41, %42 : vector<8x1xf32>
      %cst_29 = arith.constant 9.99999996E-13 : f32
      %44 = vector.broadcast %cst_29 : f32 to vector<8x1xf32>
      %45 = arith.addf %43, %44 : vector<8x1xf32>
      %46 = math.rsqrt %45 : vector<8x1xf32>
      %47 = vector.broadcast %37 : vector<8x1xf32> to vector<8x128xf32>
      %48 = arith.subf %30, %47 : vector<8x128xf32>
      %49 = vector.broadcast %46 : vector<8x1xf32> to vector<8x128xf32>
      %50 = arith.mulf %48, %49 : vector<8x128xf32>
      %c0_30 = arith.constant 0 : index
      %c0_31 = arith.constant 0 : index
      %51 = vector.load %arg8[%c0_30, %c0_31] : memref<1x128xf32, #tpu.memory_space<vmem>>, vector<1x128xf32>
      %52 = vector.broadcast %51 : vector<1x128xf32> to vector<8x128xf32>
      %53 = arith.mulf %50, %52 : vector<8x128xf32>
      %c0_32 = arith.constant 0 : index
      %c0_33 = arith.constant 0 : index
      %54 = vector.load %arg9[%c0_32, %c0_33] : memref<1x128xf32, #tpu.memory_space<vmem>>, vector<1x128xf32>
      %55 = vector.broadcast %54 : vector<1x128xf32> to vector<8x128xf32>
      %56 = arith.addf %53, %55 : vector<8x128xf32>
      %c0_34 = arith.constant 0 : index
      %c0_35 = arith.constant 0 : index
      %57 = vector.load %arg10[%c0_34, %c0_35] : memref<8x128xf32, #tpu.memory_space<vmem>>, vector<8x128xf32>
      tpu.vector_store %arg10[%c0_34, %c0_35], %56 {strides = array<i32>} : memref<8x128xf32, #tpu.memory_space<vmem>>, vector<8x128xf32>,
    } else {
    }
    return
  }
  func.func @transform_0(%arg0: i32, %arg1: i32) -> (i32, i32) {
    %c0_i32 = arith.constant 0 : i32
    %c0_i32_0 = arith.constant 0 : i32
    return %arg0, %c0_i32 : i32, i32
  }
  func.func @transform_1(%arg0: i32, %arg1: i32) -> (i32, i32) {
    %c0_i32 = arith.constant 0 : i32
    %c0_i32_0 = arith.constant 0 : i32
    return %c0_i32, %arg1 : i32, i32
  }
  func.func @transform_2(%arg0: i32, %arg1: i32) -> (i32, i32) {
    %c0_i32 = arith.constant 0 : i32
    %c0_i32_0 = arith.constant 0 : i32
    return %c0_i32, %arg1 : i32, i32
  }
  func.func @transform_3(%arg0: i32, %arg1: i32) -> (i32, i32) {
    %c0_i32 = arith.constant 0 : i32
    %c0_i32_0 = arith.constant 0 : i32
    return %arg1, %c0_i32 : i32, i32
  }
  func.func @transform_4(%arg0: i32, %arg1: i32) -> (i32, i32) {
    %c0_i32 = arith.constant 0 : i32
    %c0_i32_0 = arith.constant 0 : i32
    %c0_i32_1 = arith.constant 0 : i32
    return %c0_i32, %c0_i32_0 : i32, i32
  }
  func.func @transform_5(%arg0: i32, %arg1: i32) -> (i32, i32) {
    %c0_i32 = arith.constant 0 : i32
    %c0_i32_0 = arith.constant 0 : i32
    return %arg0, %c0_i32 : i32, i32
  }
  func.func @transform_6(%arg0: i32, %arg1: i32) -> (i32, i32) {
    %c0_i32 = arith.constant 0 : i32
    %c0_i32_0 = arith.constant 0 : i32
    %c0_i32_1 = arith.constant 0 : i32
    return %c0_i32, %c0_i32_0 : i32, i32
  }
  func.func @transform_7(%arg0: i32, %arg1: i32) -> (i32, i32) {
    %c0_i32 = arith.constant 0 : i32
    %c0_i32_0 = arith.constant 0 : i32
    %c0_i32_1 = arith.constant 0 : i32
    return %c0_i32, %c0_i32_0 : i32, i32
  }
  func.func @transform_8(%arg0: i32, %arg1: i32) -> (i32, i32) {
    %c0_i32 = arith.constant 0 : i32
    %c0_i32_0 = arith.constant 0 : i32
    return %arg0, %c0_i32 : i32, i32
  }
}

module attributes {stable_mosaic.version = 11 : i64} {
  func.func @_ffn_fused_kernel(%arg0: i32, %arg1: i32, %arg2: memref<8x128xf32, #tpu.memory_space<vmem>>, %arg3: memref<128x512xf32, #tpu.memory_space<vmem>>, %arg4: memref<1x512xf32, #tpu.memory_space<vmem>>, %arg5: memref<512x128xf32, #tpu.memory_space<vmem>>, %arg6: memref<1x128xf32, #tpu.memory_space<vmem>>, %arg7: memref<8x128xf32, #tpu.memory_space<vmem>>, %arg8: memref<1x128xf32, #tpu.memory_space<vmem>>, %arg9: memref<1x128xf32, #tpu.memory_space<vmem>>, %arg10: memref<8x128xf32, #tpu.memory_space<vmem>>, %arg11: memref<8x128xf32, #tpu.memory_space<vmem>>) attributes {dimension_semantics = [#tpu.dimension_semantics<parallel>, #tpu.dimension_semantics<arbitrary>], iteration_bounds = array<i64: 2, 1>, scalar_prefetch = 0 : i64, scratch_operands = 1 : i64, tpu.core_type = #tpu.core_type<tc>, window_params = [{transform_indices = @transform_0, window_bounds = array<i64: 8, 128>}, {transform_indices = @transform_1, window_bounds = array<i64: 128, 512>}, {transform_indices = @transform_2, window_bounds = array<i64: 1, 512>}, {transform_indices = @transform_3, window_bounds = array<i64: 512, 128>}, {pipeline_mode = #tpu.pipeline_mode<synchronous>, transform_indices = @transform_4, window_bounds = array<i64: 1, 128>}, {transform_indices = @transform_5, window_bounds = array<i64: 8, 128>}, {pipeline_mode = #tpu.pipeline_mode<synchronous>, transform_indices = @transform_6, window_bounds = array<i64: 1, 128>}, {pipeline_mode = #tpu.pipeline_mode<synchronous>, transform_indices = @transform_7, window_bounds = array<i64: 1, 128>}, {transform_indices = @transform_8, window_bounds = array<i64: 8, 128>}]} {
    %c0_i32 = arith.constant 0 : i32
    %0 = arith.cmpi eq, %arg1, %c0_i32 : i32
    %1 = arith.extui %0 : i1 to i32
    %c0_i32_0 = arith.constant 0 : i32
    %2 = arith.cmpi ne, %1, %c0_i32_0 : i32
    scf.if %2 {
      %cst_18 = arith.constant 0.000000e+00 : f32
      %25 = vector.broadcast %cst_18 : f32 to vector<8x128xf32>
      %c0_19 = arith.constant 0 : index
      %c0_20 = arith.constant 0 : index
      %26 = vector.load %arg11[%c0_19, %c0_20] : memref<8x128xf32, #tpu.memory_space<vmem>>, vector<8x128xf32>
      tpu.vector_store %arg11[%c0_19, %c0_20], %25 {strides = array<i32>} : memref<8x128xf32, #tpu.memory_space<vmem>>, vector<8x128xf32>,
    } else {
    }
    %c0 = arith.constant 0 : index
    %c0_1 = arith.constant 0 : index
    %3 = vector.load %arg2[%c0, %c0_1] : memref<8x128xf32, #tpu.memory_space<vmem>>, vector<8x128xf32>
    %c0_2 = arith.constant 0 : index
    %c0_3 = arith.constant 0 : index
    %4 = vector.load %arg3[%c0_2, %c0_3] : memref<128x512xf32, #tpu.memory_space<vmem>>, vector<128x512xf32>
    %cst = arith.constant dense<0.000000e+00> : vector<8x512xf32>
    %5 = tpu.matmul %3, %4, %cst {dimension_numbers = #tpu.dot_dimension_numbers<[1], [0], [0], [1], [0, 0, 1, 1], [], []>} : vector<8x128xf32>, vector<128x512xf32>, vector<8x512xf32> -> vector<8x512xf32>
    %c0_4 = arith.constant 0 : index
    %c0_5 = arith.constant 0 : index
    %6 = vector.load %arg4[%c0_4, %c0_5] : memref<1x512xf32, #tpu.memory_space<vmem>>, vector<1x512xf32>
    %7 = vector.broadcast %6 : vector<1x512xf32> to vector<8x512xf32>
    %8 = arith.addf %5, %7 : vector<8x512xf32>
    %cst_6 = arith.constant 5.000000e-01 : f32
    %9 = vector.broadcast %cst_6 : f32 to vector<8x512xf32>
    %10 = arith.mulf %9, %8 : vector<8x512xf32>
    %cst_7 = arith.constant 0.707106769 : f32
    %11 = vector.broadcast %cst_7 : f32 to vector<8x512xf32>
    %12 = arith.mulf %8, %11 : vector<8x512xf32>
    %13 = math.erf %12 : vector<8x512xf32>
    %cst_8 = arith.constant 1.000000e+00 : f32
    %14 = vector.broadcast %cst_8 : f32 to vector<8x512xf32>
    %15 = arith.addf %14, %13 : vector<8x512xf32>
    %16 = arith.mulf %10, %15 : vector<8x512xf32>
    %c0_9 = arith.constant 0 : index
    %c0_10 = arith.constant 0 : index
    %17 = vector.load %arg11[%c0_9, %c0_10] : memref<8x128xf32, #tpu.memory_space<vmem>>, vector<8x128xf32>
    %c0_11 = arith.constant 0 : index
    %c0_12 = arith.constant 0 : index
    %18 = vector.load %arg5[%c0_11, %c0_12] : memref<512x128xf32, #tpu.memory_space<vmem>>, vector<512x128xf32>
    %cst_13 = arith.constant dense<0.000000e+00> : vector<8x128xf32>
    %19 = tpu.matmul %16, %18, %cst_13 {dimension_numbers = #tpu.dot_dimension_numbers<[1], [0], [0], [1], [0, 0, 1, 1], [], []>} : vector<8x512xf32>, vector<512x128xf32>, vector<8x128xf32> -> vector<8x128xf32>
    %20 = arith.addf %17, %19 : vector<8x128xf32>
    %c0_14 = arith.constant 0 : index
    %c0_15 = arith.constant 0 : index
    %21 = vector.load %arg11[%c0_14, %c0_15] : memref<8x128xf32, #tpu.memory_space<vmem>>, vector<8x128xf32>
    tpu.vector_store %arg11[%c0_14, %c0_15], %20 {strides = array<i32>} : memref<8x128xf32, #tpu.memory_space<vmem>>, vector<8x128xf32>,
    %c0_i32_16 = arith.constant 0 : i32
    %22 = arith.cmpi eq, %arg1, %c0_i32_16 : i32
    %23 = arith.extui %22 : i1 to i32
    %c0_i32_17 = arith.constant 0 : i32
    %24 = arith.cmpi ne, %23, %c0_i32_17 : i32
    scf.if %24 {
      %c0_18 = arith.constant 0 : index
      %c0_19 = arith.constant 0 : index
      %25 = vector.load %arg11[%c0_18, %c0_19] : memref<8x128xf32, #tpu.memory_space<vmem>>, vector<8x128xf32>
      %c0_20 = arith.constant 0 : index
      %c0_21 = arith.constant 0 : index
      %26 = vector.load %arg6[%c0_20, %c0_21] : memref<1x128xf32, #tpu.memory_space<vmem>>, vector<1x128xf32>
      %27 = vector.broadcast %26 : vector<1x128xf32> to vector<8x128xf32>
      %28 = arith.addf %25, %27 : vector<8x128xf32>
      %c0_22 = arith.constant 0 : index
      %c0_23 = arith.constant 0 : index
      %29 = vector.load %arg7[%c0_22, %c0_23] : memref<8x128xf32, #tpu.memory_space<vmem>>, vector<8x128xf32>
      %30 = arith.addf %28, %29 : vector<8x128xf32>
      %cst_24 = arith.constant dense<0.000000e+00> : vector<8xf32>
      %31 = vector.multi_reduction <add>, %30, %cst_24 [1] : vector<8x128xf32> to vector<8xf32>
      %32 = vector.shape_cast %31 : vector<8xf32> to vector<8x1xf32>
      %33 = arith.mulf %30, %30 : vector<8x128xf32>
      %cst_25 = arith.constant dense<0.000000e+00> : vector<8xf32>
      %34 = vector.multi_reduction <add>, %33, %cst_25 [1] : vector<8x128xf32> to vector<8xf32>
      %35 = vector.shape_cast %34 : vector<8xf32> to vector<8x1xf32>
      %cst_26 = arith.constant 7.812500e-03 : f32
      %36 = vector.broadcast %cst_26 : f32 to vector<8x1xf32>
      %37 = arith.mulf %32, %36 : vector<8x1xf32>
      %cst_27 = arith.constant 7.812500e-03 : f32
      %38 = vector.broadcast %cst_27 : f32 to vector<8x1xf32>
      %39 = arith.mulf %35, %38 : vector<8x1xf32>
      %40 = arith.mulf %37, %37 : vector<8x1xf32>
      %41 = arith.subf %39, %40 : vector<8x1xf32>
      %cst_28 = arith.constant 0.000000e+00 : f32
      %42 = vector.broadcast %cst_28 : f32 to vector<8x1xf32>
      %43 = arith.maximumf %41, %42 : vector<8x1xf32>
      %cst_29 = arith.constant 9.99999996E-13 : f32
      %44 = vector.broadcast %cst_29 : f32 to vector<8x1xf32>
      %45 = arith.addf %43, %44 : vector<8x1xf32>
      %46 = math.rsqrt %45 : vector<8x1xf32>
      %47 = vector.broadcast %37 : vector<8x1xf32> to vector<8x128xf32>
      %48 = arith.subf %30, %47 : vector<8x128xf32>
      %49 = vector.broadcast %46 : vector<8x1xf32> to vector<8x128xf32>
      %50 = arith.mulf %48, %49 : vector<8x128xf32>
      %c0_30 = arith.constant 0 : index
      %c0_31 = arith.constant 0 : index
      %51 = vector.load %arg8[%c0_30, %c0_31] : memref<1x128xf32, #tpu.memory_space<vmem>>, vector<1x128xf32>
      %52 = vector.broadcast %51 : vector<1x128xf32> to vector<8x128xf32>
      %53 = arith.mulf %50, %52 : vector<8x128xf32>
      %c0_32 = arith.constant 0 : index
      %c0_33 = arith.constant 0 : index
      %54 = vector.load %arg9[%c0_32, %c0_33] : memref<1x128xf32, #tpu.memory_space<vmem>>, vector<1x128xf32>
      %55 = vector.broadcast %54 : vector<1x128xf32> to vector<8x128xf32>
      %56 = arith.addf %53, %55 : vector<8x128xf32>
      %c0_34 = arith.constant 0 : index
      %c0_35 = arith.constant 0 : index
      %57 = vector.load %arg10[%c0_34, %c0_35] : memref<8x128xf32, #tpu.memory_space<vmem>>, vector<8x128xf32>
      tpu.vector_store %arg10[%c0_34, %c0_35], %56 {strides = array<i32>} : memref<8x128xf32, #tpu.memory_space<vmem>>, vector<8x128xf32>,
    } else {
    }
    return
  }
  func.func @transform_0(%arg0: i32, %arg1: i32) -> (i32, i32) {
    %c0_i32 = arith.constant 0 : i32
    %c0_i32_0 = arith.constant 0 : i32
    return %arg0, %c0_i32 : i32, i32
  }
  func.func @transform_1(%arg0: i32, %arg1: i32) -> (i32, i32) {
    %c0_i32 = arith.constant 0 : i32
    %c0_i32_0 = arith.constant 0 : i32
    return %c0_i32, %arg1 : i32, i32
  }
  func.func @transform_2(%arg0: i32, %arg1: i32) -> (i32, i32) {
    %c0_i32 = arith.constant 0 : i32
    %c0_i32_0 = arith.constant 0 : i32
    return %c0_i32, %arg1 : i32, i32
  }
  func.func @transform_3(%arg0: i32, %arg1: i32) -> (i32, i32) {
    %c0_i32 = arith.constant 0 : i32
    %c0_i32_0 = arith.constant 0 : i32
    return %arg1, %c0_i32 : i32, i32
  }
  func.func @transform_4(%arg0: i32, %arg1: i32) -> (i32, i32) {
    %c0_i32 = arith.constant 0 : i32
    %c0_i32_0 = arith.constant 0 : i32
    %c0_i32_1 = arith.constant 0 : i32
    return %c0_i32, %c0_i32_0 : i32, i32
  }
  func.func @transform_5(%arg0: i32, %arg1: i32) -> (i32, i32) {
    %c0_i32 = arith.constant 0 : i32
    %c0_i32_0 = arith.constant 0 : i32
    return %arg0, %c0_i32 : i32, i32
  }
  func.func @transform_6(%arg0: i32, %arg1: i32) -> (i32, i32) {
    %c0_i32 = arith.constant 0 : i32
    %c0_i32_0 = arith.constant 0 : i32
    %c0_i32_1 = arith.constant 0 : i32
    return %c0_i32, %c0_i32_0 : i32, i32
  }
  func.func @transform_7(%arg0: i32, %arg1: i32) -> (i32, i32) {
    %c0_i32 = arith.constant 0 : i32
    %c0_i32_0 = arith.constant 0 : i32
    %c0_i32_1 = arith.constant 0 : i32
    return %c0_i32, %c0_i32_0 : i32, i32
  }
  func.func @transform_8(%arg0: i32, %arg1: i32) -> (i32, i32) {
    %c0_i32 = arith.constant 0 : i32
    %c0_i32_0 = arith.constant 0 : i32
    return %arg0, %c0_i32 : i32, i32
  }
}

</mosaic_0001>

<llo_original>
// kernel: bert_encoder_ffn_tucker_forward.3
$region0: #{bert_encoder_ffn_tucker_forward.3}
  #allocation0 [shape = 'u32[]', space=smem, size = 0x4, offset = 0x4, fixed_abs, tag = 'smem constant byte address 0x4 - core index']
  #allocation1 [shape = 'u32[144,128]{1,0:T(1,128)}', space=vmem, size = 0x12000, scoped, tag = 'internal scratch']
  #allocation2 [shape = 'f32[8,128]{1,0:T(8,128)}', space=vmem, size = 0x1000, scoped, tag = 'scratch operand']
  %s0 = inlined_call_operand.vmem [shape: f32[16,128], index: 0, kind: input, shape index: {}, may-alias: {0,5}]
  %s1 = inlined_call_operand.vmem [shape: f32[128,512], index: 1, kind: input, shape index: {}]
  %s2 = inlined_call_operand.vmem [shape: f32[1,512], index: 2, kind: input, shape index: {}]
  %s3 = inlined_call_operand.vmem [shape: f32[512,128], index: 3, kind: input, shape index: {}]
  %s4 = inlined_call_operand.vmem [shape: f32[1,128], index: 4, kind: input, shape index: {}]
  %s5 = inlined_call_operand.vmem [shape: f32[16,128], index: 5, kind: input, shape index: {}, may-alias: {0,5}]
  %s6 = inlined_call_operand.vmem [shape: f32[1,128], index: 6, kind: input, shape index: {}]
  %s7 = inlined_call_operand.vmem [shape: f32[1,128], index: 7, kind: input, shape index: {}]
  %s8 = inlined_call_operand.hbm [shape: f32[16,128], index: 8, kind: output, shape index: {}]
  %s9 = sld [smem:[#allocation0]]
  $region73: #{bert_encoder_ffn_tucker_forward.3} parent=0
    _
  %s11 = ssub.s32 1, %s9
  %s12 = scalar_select 0, %s11, %s9
  $region1: #{bert_encoder_ffn_tucker_forward.3} parent=0
    #allocation3 [shape = 'u8[8192]{0}', space=vmem, size = 0x2000, scoped, tag = 'output window, operand 0']
    #allocation4 [shape = 's32[2]{0}', space=sflag, size = 0x8, scoped, tag = 'scoped memory for bert_encoder_ffn_tucker_forward.3']
    %13 = vsyncpa [#allocation4], 0
    %s14 = scalar_lea.sflag [#allocation4], 1
    %15 = vsyncpa %s14, 0
    loop: start=0, step=1, limit=4
    $region2: #{bert_encoder_ffn_tucker_forward.3} parent=1 // loop_pre_header
      _
    $region3: #{bert_encoder_ffn_tucker_forward.3} parent=1 // loop_header
      %s17 = sphi 0, %s21
      %p18 = scmp.ge.s32.totalorder %s17, 4
      %s24 = sphi 0, %s36
      %s25 = sphi 0, %s32
      %s26 = sphi 0, %s24
      %s27 = sphi 0, %s25
      %s28 = sphi 0, %s26
      %s29 = sphi 0, %s27
      %s39 = sphi 0, %s41
      %s42 = sphi 0, %s39
      %s43 = sphi 0, %s42
      %s59 = sphi 0, %s43
      %s65 = sphi 0, %s67
      %s68 = sphi 0, %s65
      %s69 = sphi 0, %s68
      %s85 = sphi 0, %s69
      %s91 = sphi 0, %s93
      %s94 = sphi 0, %s91
      %s95 = sphi 0, %s94
      %s111 = sphi 0, %s95
      %s117 = sphi 0, %s119
      %s120 = sphi 0, %s117
      %s121 = sphi 0, %s120
      %s137 = sphi 0, %s121
      %s141 = sphi 0, %s141
      %s143 = sphi 0, %s141
      %s144 = sphi 0, %s143
      %s158 = sphi 0, %s144
      %s164 = sphi 0, %s166
      %s167 = sphi 0, %s164
      %s168 = sphi 0, %s167
      %s184 = sphi 0, %s168
      %s188 = sphi 0, %s188
      %s190 = sphi 0, %s188
      %s191 = sphi 0, %s190
      %s205 = sphi 0, %s191
      %s209 = sphi 0, %s209
      %s211 = sphi 0, %s209
      %s212 = sphi 0, %s211
      %s226 = sphi 0, %s212
      %s232 = sphi 0, %s234
      %s235 = sphi 0, %s232
      %s236 = sphi 0, %s235
      %s252 = sphi 0, %s236
    $region4: #{bert_encoder_ffn_tucker_forward.3} parent=1 // loop_header_branch
      %20 = sbr.rel (%p18) target = $region8
    $region5: #{bert_encoder_ffn_tucker_forward.3} parent=1 // loop_body
      %s22 = ssub.s32 %s17, 1
      %s23 = ssub.s32 %s17, 2
      %s30 = sadd.s32 1, %s25
      %p31 = scmp.ge.s32.totalorder %s30, 1
      %s32 = scalar_select %p31, 0, %s30
      %s33 = sadd.s32 1, %s24
      %s34 = scalar_select %p31, %s33, %s24
      %p35 = scmp.ge.s32.totalorder %s34, 2
      %s36 = scalar_select %p35, 0, %s34
      %s37 = ssub.s32 %s24, %s36
      %p38 = scmp.eq.s32.totalorder %s37, 0
      %s40 = sadd.s32 %s39, 1
      %s41 = scalar_select %p38, %s39, %s40
      %p44 = pneg %p38
      %p45 = scmp.eq.s32.totalorder %s17, 1
      %p46 = por %p44, %p45
      %p47 = scmp.ne.s32.totalorder %s39, %s42
      %p48 = scmp.eq.s32.totalorder %s17, 0
      %p49 = por %p47, %p48
      %p50 = scmp.ne.s32.totalorder %s39, %s42
      %p51 = scmp.eq.s32.totalorder %s22, 1
      %p52 = por %p50, %p51
      %p53 = scmp.ne.s32.totalorder %s42, %s43
      %p54 = scmp.eq.s32.totalorder %s22, 0
      %p55 = por %p53, %p54
      %p56 = scmp.ne.s32.totalorder %s42, %s43
      %p57 = scmp.eq.s32.totalorder %s23, 1
      %p58 = por %p56, %p57
      %p60 = scmp.ne.s32.totalorder %s43, %s59
      %p61 = scmp.eq.s32.totalorder %s23, 0
      %p62 = por %p60, %p61
      %s63 = ssub.s32 %s25, %s32
      %p64 = scmp.eq.s32.totalorder %s63, 0
      %s66 = sadd.s32 %s65, 1
      %s67 = scalar_select %p64, %s65, %s66
      %p70 = pneg %p64
      %p71 = scmp.eq.s32.totalorder %s17, 1
      %p72 = por %p70, %p71
      %p73 = scmp.ne.s32.totalorder %s65, %s68
      %p74 = scmp.eq.s32.totalorder %s17, 0
      %p75 = por %p73, %p74
      %p76 = scmp.ne.s32.totalorder %s65, %s68
      %p77 = scmp.eq.s32.totalorder %s22, 1
      %p78 = por %p76, %p77
      %p79 = scmp.ne.s32.totalorder %s68, %s69
      %p80 = scmp.eq.s32.totalorder %s22, 0
      %p81 = por %p79, %p80
      %p82 = scmp.ne.s32.totalorder %s68, %s69
      %p83 = scmp.eq.s32.totalorder %s23, 1
      %p84 = por %p82, %p83
      %p86 = scmp.ne.s32.totalorder %s69, %s85
      %p87 = scmp.eq.s32.totalorder %s23, 0
      %p88 = por %p86, %p87
      %s89 = ssub.s32 %s25, %s32
      %p90 = scmp.eq.s32.totalorder %s89, 0
      %s92 = sadd.s32 %s91, 1
      %s93 = scalar_select %p90, %s91, %s92
      %p96 = pneg %p90
      %p97 = scmp.eq.s32.totalorder %s17, 1
      %p98 = por %p96, %p97
      %p99 = scmp.ne.s32.totalorder %s91, %s94
      %p100 = scmp.eq.s32.totalorder %s17, 0
      %p101 = por %p99, %p100
      %p102 = scmp.ne.s32.totalorder %s91, %s94
      %p103 = scmp.eq.s32.totalorder %s22, 1
      %p104 = por %p102, %p103
      %p105 = scmp.ne.s32.totalorder %s94, %s95
      %p106 = scmp.eq.s32.totalorder %s22, 0
      %p107 = por %p105, %p106
      %p108 = scmp.ne.s32.totalorder %s94, %s95
      %p109 = scmp.eq.s32.totalorder %s23, 1
      %p110 = por %p108, %p109
      %p112 = scmp.ne.s32.totalorder %s95, %s111
      %p113 = scmp.eq.s32.totalorder %s23, 0
      %p114 = por %p112, %p113
      %s115 = ssub.s32 %s25, %s32
      %p116 = scmp.eq.s32.totalorder %s115, 0
      %s118 = sadd.s32 %s117, 1
      %s119 = scalar_select %p116, %s117, %s118
      %p122 = pneg %p116
      %p123 = scmp.eq.s32.totalorder %s17, 1
      %p124 = por %p122, %p123
      %p125 = scmp.ne.s32.totalorder %s117, %s120
      %p126 = scmp.eq.s32.totalorder %s17, 0
      %p127 = por %p125, %p126
      %p128 = scmp.ne.s32.totalorder %s117, %s120
      %p129 = scmp.eq.s32.totalorder %s22, 1
      %p130 = por %p128, %p129
      %p131 = scmp.ne.s32.totalorder %s120, %s121
      %p132 = scmp.eq.s32.totalorder %s22, 0
      %p133 = por %p131, %p132
      %p134 = scmp.ne.s32.totalorder %s120, %s121
      %p135 = scmp.eq.s32.totalorder %s23, 1
      %p136 = por %p134, %p135
      %p138 = scmp.ne.s32.totalorder %s121, %s137
      %p139 = scmp.eq.s32.totalorder %s23, 0
      %p140 = por %p138, %p139
      %s142 = sadd.s32 %s141, 1
      %p145 = scmp.eq.s32.totalorder %s17, 1
      %p146 = scmp.ne.s32.totalorder %s141, %s143
      %p147 = scmp.eq.s32.totalorder %s17, 0
      %p148 = por %p146, %p147
      %p149 = scmp.ne.s32.totalorder %s141, %s143
      %p150 = scmp.eq.s32.totalorder %s22, 1
      %p151 = por %p149, %p150
      %p152 = scmp.ne.s32.totalorder %s143, %s144
      %p153 = scmp.eq.s32.totalorder %s22, 0
      %p154 = por %p152, %p153
      %p155 = scmp.ne.s32.totalorder %s143, %s144
      %p156 = scmp.eq.s32.totalorder %s23, 1
      %p157 = por %p155, %p156
      %p159 = scmp.ne.s32.totalorder %s144, %s158
      %p160 = scmp.eq.s32.totalorder %s23, 0
      %p161 = por %p159, %p160
      %s162 = ssub.s32 %s24, %s36
      %p163 = scmp.eq.s32.totalorder %s162, 0
      %s165 = sadd.s32 %s164, 1
      %s166 = scalar_select %p163, %s164, %s165
      %p169 = pneg %p163
      %p170 = scmp.eq.s32.totalorder %s17, 1
      %p171 = por %p169, %p170
      %p172 = scmp.ne.s32.totalorder %s164, %s167
      %p173 = scmp.eq.s32.totalorder %s17, 0
      %p174 = por %p172, %p173
      %p175 = scmp.ne.s32.totalorder %s164, %s167
      %p176 = scmp.eq.s32.totalorder %s22, 1
      %p177 = por %p175, %p176
      %p178 = scmp.ne.s32.totalorder %s167, %s168
      %p179 = scmp.eq.s32.totalorder %s22, 0
      %p180 = por %p178, %p179
      %p181 = scmp.ne.s32.totalorder %s167, %s168
      %p182 = scmp.eq.s32.totalorder %s23, 1
      %p183 = por %p181, %p182
      %p185 = scmp.ne.s32.totalorder %s168, %s184
      %p186 = scmp.eq.s32.totalorder %s23, 0
      %p187 = por %p185, %p186
      %s189 = sadd.s32 %s188, 1
      %p192 = scmp.eq.s32.totalorder %s17, 1
      %p193 = scmp.ne.s32.totalorder %s188, %s190
      %p194 = scmp.eq.s32.totalorder %s17, 0
      %p195 = por %p193, %p194
      %p196 = scmp.ne.s32.totalorder %s188, %s190
      %p197 = scmp.eq.s32.totalorder %s22, 1
      %p198 = por %p196, %p197
      %p199 = scmp.ne.s32.totalorder %s190, %s191
      %p200 = scmp.eq.s32.totalorder %s22, 0
      %p201 = por %p199, %p200
      %p202 = scmp.ne.s32.totalorder %s190, %s191
      %p203 = scmp.eq.s32.totalorder %s23, 1
      %p204 = por %p202, %p203
      %p206 = scmp.ne.s32.totalorder %s191, %s205
      %p207 = scmp.eq.s32.totalorder %s23, 0
      %p208 = por %p206, %p207
      %s210 = sadd.s32 %s209, 1
      %p213 = scmp.eq.s32.totalorder %s17, 1
      %p214 = scmp.ne.s32.totalorder %s209, %s211
      %p215 = scmp.eq.s32.totalorder %s17, 0
      %p216 = por %p214, %p215
      %p217 = scmp.ne.s32.totalorder %s209, %s211
      %p218 = scmp.eq.s32.totalorder %s22, 1
      %p219 = por %p217, %p218
      %p220 = scmp.ne.s32.totalorder %s211, %s212
      %p221 = scmp.eq.s32.totalorder %s22, 0
      %p222 = por %p220, %p221
      %p223 = scmp.ne.s32.totalorder %s211, %s212
      %p224 = scmp.eq.s32.totalorder %s23, 1
      %p225 = por %p223, %p224
      %p227 = scmp.ne.s32.totalorder %s212, %s226
      %p228 = scmp.eq.s32.totalorder %s23, 0
      %p229 = por %p227, %p228
      %s230 = ssub.s32 %s24, %s36
      %p231 = scmp.eq.s32.totalorder %s230, 0
      %s233 = sadd.s32 %s232, 1
      %s234 = scalar_select %p231, %s232, %s233
      %p237 = pneg %p231
      %p238 = scmp.eq.s32.totalorder %s17, 1
      %p239 = por %p237, %p238
      %p240 = scmp.ne.s32.totalorder %s232, %s235
      %p241 = scmp.eq.s32.totalorder %s17, 0
      %p242 = por %p240, %p241
      %p243 = scmp.ne.s32.totalorder %s232, %s235
      %p244 = scmp.eq.s32.totalorder %s22, 1
      %p245 = por %p243, %p244
      %p246 = scmp.ne.s32.totalorder %s235, %s236
      %p247 = scmp.eq.s32.totalorder %s22, 0
      %p248 = por %p246, %p247
      %p249 = scmp.ne.s32.totalorder %s235, %s236
      %p250 = scmp.eq.s32.totalorder %s23, 1
      %p251 = por %p249, %p250
      %p253 = scmp.ne.s32.totalorder %s236, %s252
      %p254 = scmp.eq.s32.totalorder %s23, 0
      %p255 = por %p253, %p254
      %p256 = scmp.le.s32.totalorder 1, %s17
      %p257 = scmp.lt.s32.totalorder %s17, 3
      %p258 = pnand %p256, %p257
      %p259 = pneg %p258
      // Predicated region
      $region9: #{bert_encoder_ffn_tucker_forward.3} parent=5 // pred_check
        _
      $region10: #{bert_encoder_ffn_tucker_forward.3} parent=5 // pred_check_branch
        %261 = sbr.rel (%p258) target = $region12
      $region11: #{bert_encoder_ffn_tucker_forward.3} parent=5 // pred_region
        %s262 = ssub.s32 %s17, 1
        // Predicated region
        $region13: #{bert_encoder_ffn_tucker_forward.3} parent=11 // pred_check
          %p263 = pneg %p81
        $region14: #{bert_encoder_ffn_tucker_forward.3} parent=11 // pred_check_branch
          %265 = sbr.rel (%p263) target = $region16
        $region15: #{bert_encoder_ffn_tucker_forward.3} parent=11 // pred_region
          %s266 = smul.u32 4, %s27
          %p267 = scmp.lt.s32.totalorder %s266, 3
          %s268 = scalar_select %p267, %s266, 3
          %s269 = smul.addr %s268, 8
          %s270 = scalar_lea.vmem %s1, %s269
          %s271 = smul.u32 4, %s27
        $region16: #{bert_encoder_ffn_tucker_forward.3} parent=11 // pred_fallthru
          _
        // Predicated region
        $region17: #{bert_encoder_ffn_tucker_forward.3} parent=11 // pred_check
          %p272 = pneg %p107
        $region18: #{bert_encoder_ffn_tucker_forward.3} parent=11 // pred_check_branch
          %274 = sbr.rel (%p272) target = $region20
        $region19: #{bert_encoder_ffn_tucker_forward.3} parent=11 // pred_region
          %s275 = smul.u32 4, %s27
          %p276 = scmp.lt.s32.totalorder %s275, 3
          %s277 = scalar_select %p276, %s275, 3
          %s278 = scalar_lea.vmem %s2, %s277
          %s279 = smul.u32 4, %s27
        $region20: #{bert_encoder_ffn_tucker_forward.3} parent=11 // pred_fallthru
          _
        // Predicated region
        $region21: #{bert_encoder_ffn_tucker_forward.3} parent=11 // pred_check
          %p280 = pneg %p133
        $region22: #{bert_encoder_ffn_tucker_forward.3} parent=11 // pred_check_branch
          %282 = sbr.rel (%p280) target = $region24
        $region23: #{bert_encoder_ffn_tucker_forward.3} parent=11 // pred_region
          %s283 = smul.u32 64, %s27
          %p284 = scmp.lt.s32.totalorder %s283, 63
          %s285 = scalar_select %p284, %s283, 63
          %s286 = smul.addr %s285, 8
          %s287 = scalar_lea.vmem %s3, %s286
          %s288 = smul.u32 64, %s27
        $region24: #{bert_encoder_ffn_tucker_forward.3} parent=11 // pred_fallthru
          _
        // Predicated region
        $region25: #{bert_encoder_ffn_tucker_forward.3} parent=11 // pred_check
          %p289 = pneg %p154
        $region26: #{bert_encoder_ffn_tucker_forward.3} parent=11 // pred_check_branch
          %291 = sbr.rel (%p289) target = $region28
        $region27: #{bert_encoder_ffn_tucker_forward.3} parent=11 // pred_region
          _
        $region28: #{bert_encoder_ffn_tucker_forward.3} parent=11 // pred_fallthru
          _
        // Predicated region
        $region29: #{bert_encoder_ffn_tucker_forward.3} parent=11 // pred_check
          %p292 = pneg %p201
        $region30: #{bert_encoder_ffn_tucker_forward.3} parent=11 // pred_check_branch
          %294 = sbr.rel (%p292) target = $region32
        $region31: #{bert_encoder_ffn_tucker_forward.3} parent=11 // pred_region
          _
        $region32: #{bert_encoder_ffn_tucker_forward.3} parent=11 // pred_fallthru
          _
        // Predicated region
        $region33: #{bert_encoder_ffn_tucker_forward.3} parent=11 // pred_check
          %p295 = pneg %p222
        $region34: #{bert_encoder_ffn_tucker_forward.3} parent=11 // pred_check_branch
          %297 = sbr.rel (%p295) target = $region36
        $region35: #{bert_encoder_ffn_tucker_forward.3} parent=11 // pred_region
          _
        $region36: #{bert_encoder_ffn_tucker_forward.3} parent=11 // pred_fallthru
          _
      $region12: #{bert_encoder_ffn_tucker_forward.3} parent=5 // pred_fallthru
        _
      %p298 = scmp.lt.s32.totalorder %s17, 2
      // Predicated region
      $region37: #{bert_encoder_ffn_tucker_forward.3} parent=5 // pred_check
        %p299 = pneg %p298
      $region38: #{bert_encoder_ffn_tucker_forward.3} parent=5 // pred_check_branch
        %301 = sbr.rel (%p299) target = $region40
      $region39: #{bert_encoder_ffn_tucker_forward.3} parent=5 // pred_region
        // Predicated region
        $region41: #{bert_encoder_ffn_tucker_forward.3} parent=39 // pred_check
          %p302 = pneg %p49
        $region42: #{bert_encoder_ffn_tucker_forward.3} parent=39 // pred_check_branch
          %304 = sbr.rel (%p302) target = $region44
        $region43: #{bert_encoder_ffn_tucker_forward.3} parent=39 // pred_region
          %p305 = scmp.lt.s32.totalorder %s24, 1
          %s306 = scalar_select %p305, %s24, 1
          %s307 = smul.addr %s306, 8
          %s308 = scalar_lea.vmem %s0, %s307
        $region44: #{bert_encoder_ffn_tucker_forward.3} parent=39 // pred_fallthru
          _
        // Predicated region
        $region45: #{bert_encoder_ffn_tucker_forward.3} parent=39 // pred_check
          %p309 = pneg %p174
        $region46: #{bert_encoder_ffn_tucker_forward.3} parent=39 // pred_check_branch
          %311 = sbr.rel (%p309) target = $region48
        $region47: #{bert_encoder_ffn_tucker_forward.3} parent=39 // pred_region
          %p312 = scmp.lt.s32.totalorder %s24, 1
          %s313 = scalar_select %p312, %s24, 1
          %s314 = smul.addr %s313, 8
          %s315 = scalar_lea.vmem %s5, %s314
        $region48: #{bert_encoder_ffn_tucker_forward.3} parent=39 // pred_fallthru
          _
      $region40: #{bert_encoder_ffn_tucker_forward.3} parent=5 // pred_fallthru
        _
      %p316 = scmp.le.s32.totalorder 1, %s17
      %p317 = scmp.lt.s32.totalorder %s17, 3
      %p318 = pnand %p316, %p317
      %p319 = pneg %p318
      // Predicated region
      $region49: #{bert_encoder_ffn_tucker_forward.3} parent=5 // pred_check
        _
      $region50: #{bert_encoder_ffn_tucker_forward.3} parent=5 // pred_check_branch
        %321 = sbr.rel (%p318) target = $region52
      $region51: #{bert_encoder_ffn_tucker_forward.3} parent=5 // pred_region
        %s322 = ssub.s32 %s17, 1
        %p323 = scmp.lt.s32.totalorder %s26, 1
        %s324 = scalar_select %p323, %s26, 1
        %s325 = smul.addr %s324, 8
        %s326 = scalar_lea.vmem %s0, %s325
        %p327 = pneg %p55
        %p328 = pneg %p52
        %s329 = smul.u32 4, %s27
        %p330 = scmp.lt.s32.totalorder %s329, 3
        %s331 = scalar_select %p330, %s329, 3
        %s332 = smul.addr %s331, 8
        %s333 = scalar_lea.vmem %s1, %s332
        %p334 = pneg %p81
        %p335 = pneg %p78
        %s336 = smul.u32 4, %s27
        %p337 = scmp.lt.s32.totalorder %s336, 3
        %s338 = scalar_select %p337, %s336, 3
        %s339 = scalar_lea.vmem %s2, %s338
        %p340 = pneg %p107
        %p341 = pneg %p104
        %s342 = smul.u32 64, %s27
        %p343 = scmp.lt.s32.totalorder %s342, 63
        %s344 = scalar_select %p343, %s342, 63
        %s345 = smul.addr %s344, 8
        %s346 = scalar_lea.vmem %s3, %s345
        %p347 = pneg %p133
        %p348 = pneg %p130
        %p349 = pneg %p154
        %p350 = pneg %p151
        %p351 = scmp.lt.s32.totalorder %s26, 1
        %s352 = scalar_select %p351, %s26, 1
        %s353 = smul.addr %s352, 8
        %s354 = scalar_lea.vmem %s5, %s353
        %p355 = pneg %p180
        %p356 = pneg %p177
        %p357 = pneg %p201
        %p358 = pneg %p198
        %p359 = pneg %p222
        %p360 = pneg %p219
        %p361 = pneg %p248
        %p362 = pneg %p245
        %s363 = sand.u32 %s235, 1
        %s364 = scalar_lea.sflag [#allocation4], %s363
        %s365 = sand.u32 %s235, 1
        %s366 = smul.addr %s365, 8
        %s367 = scalar_lea.vmem [#allocation3], %s366
        %p368 = scmp.lt.s32.totalorder %s26, 1
        %s369 = scalar_select %p368, %s26, 1
        %s370 = smul.addr %s369, 8
        %s371 = scalar_lea.vmem %s0, %s370
        %s372 = smul.u32 4, %s27
        %p373 = scmp.lt.s32.totalorder %s372, 3
        %s374 = scalar_select %p373, %s372, 3
        %s375 = smul.addr %s374, 8
        %s376 = scalar_lea.vmem %s1, %s375
        %s377 = smul.u32 4, %s27
        %s378 = smul.u32 4, %s27
        %p379 = scmp.lt.s32.totalorder %s378, 3
        %s380 = scalar_select %p379, %s378, 3
        %s381 = scalar_lea.vmem %s2, %s380
        %s382 = smul.u32 4, %s27
        %s383 = smul.u32 64, %s27
        %p384 = scmp.lt.s32.totalorder %s383, 63
        %s385 = scalar_select %p384, %s383, 63
        %s386 = smul.addr %s385, 8
        %s387 = scalar_lea.vmem %s3, %s386
        %s388 = smul.u32 64, %s27
        %p389 = scmp.lt.s32.totalorder %s26, 1
        %s390 = scalar_select %p389, %s26, 1
        %s391 = smul.addr %s390, 8
        %s392 = scalar_lea.vmem %s5, %s391
        %p393 = scmp.eq.s32.totalorder %s27, 0
        // Predicated region
        $region53: #{bert_encoder_ffn_tucker_forward.3} parent=51 // pred_check
          %p394 = pneg %p393
        $region54: #{bert_encoder_ffn_tucker_forward.3} parent=51 // pred_check_branch
          %396 = sbr.rel (%p394) target = $region56
        $region55: #{bert_encoder_ffn_tucker_forward.3} parent=51 // pred_region
          %397 = vst [vmem:[#allocation2] sm:$0xff] 0.0
        $region56: #{bert_encoder_ffn_tucker_forward.3} parent=51 // pred_fallthru
          _
        %v398 = vld [vmem:[%s371] sm:$0xff]
        %v399 = vld [vmem:[%s376] sm:$0xff]
        %v400 = vld [vmem:[%s376 + $0x8] sm:$0xff]
        %v401 = vld [vmem:[%s376 + $0x10] sm:$0xff]
        %v402 = vld [vmem:[%s376 + $0x18] sm:$0xff]
        %v403 = vld [vmem:[%s376 + $0x20] sm:$0xff]
        %v404 = vld [vmem:[%s376 + $0x28] sm:$0xff]
        %v405 = vld [vmem:[%s376 + $0x30] sm:$0xff]
        %v406 = vld [vmem:[%s376 + $0x38] sm:$0xff]
        %v407 = vld [vmem:[%s376 + $0x40] sm:$0xff]
        %v408 = vld [vmem:[%s376 + $0x48] sm:$0xff]
        %v409 = vld [vmem:[%s376 + $0x50] sm:$0xff]
        %v410 = vld [vmem:[%s376 + $0x58] sm:$0xff]
        %v411 = vld [vmem:[%s376 + $0x60] sm:$0xff]
        %v412 = vld [vmem:[%s376 + $0x68] sm:$0xff]
        %v413 = vld [vmem:[%s376 + $0x70] sm:$0xff]
        %v414 = vld [vmem:[%s376 + $0x78] sm:$0xff]
        %v415 = vld [vmem:[%s376 + $0x80] sm:$0xff]
        %v416 = vld [vmem:[%s376 + $0x88] sm:$0xff]
        %v417 = vld [vmem:[%s376 + $0x90] sm:$0xff]
        %v418 = vld [vmem:[%s376 + $0x98] sm:$0xff]
        %v419 = vld [vmem:[%s376 + $0xa0] sm:$0xff]
        %v420 = vld [vmem:[%s376 + $0xa8] sm:$0xff]
        %v421 = vld [vmem:[%s376 + $0xb0] sm:$0xff]
        %v422 = vld [vmem:[%s376 + $0xb8] sm:$0xff]
        %v423 = vld [vmem:[%s376 + $0xc0] sm:$0xff]
        %v424 = vld [vmem:[%s376 + $0xc8] sm:$0xff]
        %v425 = vld [vmem:[%s376 + $0xd0] sm:$0xff]
        %v426 = vld [vmem:[%s376 + $0xd8] sm:$0xff]
        %v427 = vld [vmem:[%s376 + $0xe0] sm:$0xff]
        %v428 = vld [vmem:[%s376 + $0xe8] sm:$0xff]
        %v429 = vld [vmem:[%s376 + $0xf0] sm:$0xff]
        %v430 = vld [vmem:[%s376 + $0xf8] sm:$0xff]
        %v431 = vld [vmem:[%s376 + $0x100] sm:$0xff]
        %v432 = vld [vmem:[%s376 + $0x108] sm:$0xff]
        %v433 = vld [vmem:[%s376 + $0x110] sm:$0xff]
        %v434 = vld [vmem:[%s376 + $0x118] sm:$0xff]
        %v435 = vld [vmem:[%s376 + $0x120] sm:$0xff]
        %v436 = vld [vmem:[%s376 + $0x128] sm:$0xff]
        %v437 = vld [vmem:[%s376 + $0x130] sm:$0xff]
        %v438 = vld [vmem:[%s376 + $0x138] sm:$0xff]
        %v439 = vld [vmem:[%s376 + $0x140] sm:$0xff]
        %v440 = vld [vmem:[%s376 + $0x148] sm:$0xff]
        %v441 = vld [vmem:[%s376 + $0x150] sm:$0xff]
        %v442 = vld [vmem:[%s376 + $0x158] sm:$0xff]
        %v443 = vld [vmem:[%s376 + $0x160] sm:$0xff]
        %v444 = vld [vmem:[%s376 + $0x168] sm:$0xff]
        %v445 = vld [vmem:[%s376 + $0x170] sm:$0xff]
        %v446 = vld [vmem:[%s376 + $0x178] sm:$0xff]
        %v447 = vld [vmem:[%s376 + $0x180] sm:$0xff]
        %v448 = vld [vmem:[%s376 + $0x188] sm:$0xff]
        %v449 = vld [vmem:[%s376 + $0x190] sm:$0xff]
        %v450 = vld [vmem:[%s376 + $0x198] sm:$0xff]
        %v451 = vld [vmem:[%s376 + $0x1a0] sm:$0xff]
        %v452 = vld [vmem:[%s376 + $0x1a8] sm:$0xff]
        %v453 = vld [vmem:[%s376 + $0x1b0] sm:$0xff]
        %v454 = vld [vmem:[%s376 + $0x1b8] sm:$0xff]
        %v455 = vld [vmem:[%s376 + $0x1c0] sm:$0xff]
        %v456 = vld [vmem:[%s376 + $0x1c8] sm:$0xff]
        %v457 = vld [vmem:[%s376 + $0x1d0] sm:$0xff]
        %v458 = vld [vmem:[%s376 + $0x1d8] sm:$0xff]
        %v459 = vld [vmem:[%s376 + $0x1e0] sm:$0xff]
        %v460 = vld [vmem:[%s376 + $0x1e8] sm:$0xff]
        %v461 = vld [vmem:[%s376 + $0x1f0] sm:$0xff]
        %v462 = vld [vmem:[%s376 + $0x1f8] sm:$0xff]
        %v463 = vld [vmem:[%s381] sm:$0xf]
        %v465 = vlaneseq
        %v466 = vshrl.u32 %v465, 7
        %v467 = vsub.s32 0, %v466
        %v468 = vrot.slane %v463, %v467
        %v469 = vlaneseq
        %v470 = vshrl.u32 %v469, 7
        %v471 = vsub.s32 1, %v470
        %v472 = vrot.slane %v463, %v471
        %v473 = vlaneseq
        %v474 = vshrl.u32 %v473, 7
        %v475 = vsub.s32 2, %v474
        %v476 = vrot.slane %v463, %v475
        %v477 = vlaneseq
        %v478 = vshrl.u32 %v477, 7
        %v479 = vsub.s32 3, %v478
        %v480 = vrot.slane %v463, %v479
        %485 = vmatprep.subr.mxu0 %v460
        %486 = vmatpush1.msra.mxu0 %v459
        %487 = vmatprep.subr.mxu0 %v456
        %488 = vmatpush1.msra.mxu0 %v455
        %489 = vmatprep.subr.mxu0 %v452
        %490 = vmatpush1.msra.mxu0 %v451
        %491 = vmatprep.subr.mxu0 %v448
        %492 = vmatpush1.msra.mxu0 %v447
        %493 = vmatprep.subr.mxu0 %v444
        %494 = vmatpush1.msra.mxu0 %v443
        %495 = vmatprep.subr.mxu0 %v440
        %496 = vmatpush1.msra.mxu0 %v439
        %497 = vmatprep.subr.mxu0 %v436
        %498 = vmatpush1.msra.mxu0 %v435
        %499 = vmatprep.subr.mxu0 %v432
        %500 = vmatpush1.msra.mxu0 %v431
        %501 = vmatprep.subr.mxu0 %v428
        %502 = vmatpush1.msra.mxu0 %v427
        %503 = vmatprep.subr.mxu0 %v424
        %504 = vmatpush1.msra.mxu0 %v423
        %505 = vmatprep.subr.mxu0 %v420
        %506 = vmatpush1.msra.mxu0 %v419
        %507 = vmatprep.subr.mxu0 %v416
        %508 = vmatpush1.msra.mxu0 %v415
        %509 = vmatprep.subr.mxu0 %v412
        %510 = vmatpush1.msra.mxu0 %v411
        %511 = vmatprep.subr.mxu0 %v408
        %512 = vmatpush1.msra.mxu0 %v407
        %513 = vmatprep.subr.mxu0 %v404
        %514 = vmatpush1.msra.mxu0 %v403
        %515 = vmatprep.subr.mxu0 %v400
        %516 = vmatpush1.msra.mxu0 %v399
        %517 = vmatprep.subr.mxu0 0.0
        %518 = vmatpush2.msra.mxu0 0.0
        %519 = vmatprep.subr.mxu0 0.0
        %520 = vmatpush2.msra.mxu0 0.0
        %521 = vmatprep.subr.mxu0 0.0
        %522 = vmatpush2.msra.mxu0 0.0
        %523 = vmatprep.subr.mxu0 0.0
        %524 = vmatpush2.msra.mxu0 0.0
        %525 = vmatprep.subr.mxu0 0.0
        %526 = vmatpush2.msra.mxu0 0.0
        %527 = vmatprep.subr.mxu0 0.0
        %528 = vmatpush2.msra.mxu0 0.0
        %529 = vmatprep.subr.mxu0 0.0
        %530 = vmatpush2.msra.mxu0 0.0
        %531 = vmatprep.subr.mxu0 0.0
        %532 = vmatpush2.msra.mxu0 0.0
        %533 = vmatprep.subr.mxu0 0.0
        %534 = vmatpush2.msra.mxu0 0.0
        %535 = vmatprep.subr.mxu0 0.0
        %536 = vmatpush2.msra.mxu0 0.0
        %537 = vmatprep.subr.mxu0 0.0
        %538 = vmatpush2.msra.mxu0 0.0
        %539 = vmatprep.subr.mxu0 0.0
        %540 = vmatpush2.msra.mxu0 0.0
        %541 = vmatprep.subr.mxu0 0.0
        %542 = vmatpush2.msra.mxu0 0.0
        %543 = vmatprep.subr.mxu0 0.0
        %544 = vmatpush2.msra.mxu0 0.0
        %545 = vmatprep.subr.mxu0 0.0
        %546 = vmatpush2.msra.mxu0 0.0
        %547 = vmatprep.subr.mxu0 0.0
        %548 = vmatpush2.msra.mxu0 0.0
        %549 = vmatprep.mubr.f32.mxu0 0.0
        %550 = vmatmul.mubr.f32.gmra.mxu0 %v398
        %v551 = vpop.f32.mrf.mxu0
        %v552 = vadd.f32 %v468, %v551
        %v553 = vpop.f32.mrf.mxu0
        %v554 = vadd.f32 %v472, %v553
        %555 = vdwg.mxu0
        %556 = vmatprep.subr.mxu0 %v462
        %557 = vmatpush1.msra.mxu0 %v461
        %558 = vmatprep.subr.mxu0 %v458
        %559 = vmatpush1.msra.mxu0 %v457
        %560 = vmatprep.subr.mxu0 %v454
        %561 = vmatpush1.msra.mxu0 %v453
        %562 = vmatprep.subr.mxu0 %v450
        %563 = vmatpush1.msra.mxu0 %v449
        %564 = vmatprep.subr.mxu0 %v446
        %565 = vmatpush1.msra.mxu0 %v445
        %566 = vmatprep.subr.mxu0 %v442
        %567 = vmatpush1.msra.mxu0 %v441
        %568 = vmatprep.subr.mxu0 %v438
        %569 = vmatpush1.msra.mxu0 %v437
        %570 = vmatprep.subr.mxu0 %v434
        %571 = vmatpush1.msra.mxu0 %v433
        %572 = vmatprep.subr.mxu0 %v430
        %573 = vmatpush1.msra.mxu0 %v429
        %574 = vmatprep.subr.mxu0 %v426
        %575 = vmatpush1.msra.mxu0 %v425
        %576 = vmatprep.subr.mxu0 %v422
        %577 = vmatpush1.msra.mxu0 %v421
        %578 = vmatprep.subr.mxu0 %v418
        %579 = vmatpush1.msra.mxu0 %v417
        %580 = vmatprep.subr.mxu0 %v414
        %581 = vmatpush1.msra.mxu0 %v413
        %582 = vmatprep.subr.mxu0 %v410
        %583 = vmatpush1.msra.mxu0 %v409
        %584 = vmatprep.subr.mxu0 %v406
        %585 = vmatpush1.msra.mxu0 %v405
        %586 = vmatprep.subr.mxu0 %v402
        %587 = vmatpush1.msra.mxu0 %v401
        %588 = vmatprep.subr.mxu0 0.0
        %589 = vmatpush2.msra.mxu0 0.0
        %590 = vmatprep.subr.mxu0 0.0
        %591 = vmatpush2.msra.mxu0 0.0
        %592 = vmatprep.subr.mxu0 0.0
        %593 = vmatpush2.msra.mxu0 0.0
        %594 = vmatprep.subr.mxu0 0.0
        %595 = vmatpush2.msra.mxu0 0.0
        %596 = vmatprep.subr.mxu0 0.0
        %597 = vmatpush2.msra.mxu0 0.0
        %598 = vmatprep.subr.mxu0 0.0
        %599 = vmatpush2.msra.mxu0 0.0
        %600 = vmatprep.subr.mxu0 0.0
        %601 = vmatpush2.msra.mxu0 0.0
        %602 = vmatprep.subr.mxu0 0.0
        %603 = vmatpush2.msra.mxu0 0.0
        %604 = vmatprep.subr.mxu0 0.0
        %605 = vmatpush2.msra.mxu0 0.0
        %606 = vmatprep.subr.mxu0 0.0
        %607 = vmatpush2.msra.mxu0 0.0
        %608 = vmatprep.subr.mxu0 0.0
        %609 = vmatpush2.msra.mxu0 0.0
        %610 = vmatprep.subr.mxu0 0.0
        %611 = vmatpush2.msra.mxu0 0.0
        %612 = vmatprep.subr.mxu0 0.0
        %613 = vmatpush2.msra.mxu0 0.0
        %614 = vmatprep.subr.mxu0 0.0
        %615 = vmatpush2.msra.mxu0 0.0
        %616 = vmatprep.subr.mxu0 0.0
        %617 = vmatpush2.msra.mxu0 0.0
        %618 = vmatprep.subr.mxu0 0.0
        %619 = vmatpush2.msra.mxu0 0.0
        %620 = vmatprep.mubr.f32.mxu0 0.0
        %621 = vmatmul.mubr.f32.gmra.mxu0 %v398
        %v622 = vpop.f32.mrf.mxu0
        %v623 = vadd.f32 %v476, %v622
        %v624 = vpop.f32.mrf.mxu0
        %v625 = vadd.f32 %v480, %v624
        %626 = vdwg.mxu0
        %v627 = vmul.f32 %v552, 0.5
        %v628 = vmul.f32 %v554, 0.5
        %v629 = vmul.f32 %v623, 0.5
        %v630 = vmul.f32 %v625, 0.5
        %v631 = vmul.f32 %v552, 0.70710677
        %v632 = vmul.f32 %v554, 0.70710677
        %v633 = vmul.f32 %v623, 0.70710677
        %v634 = vmul.f32 %v625, 0.70710677
        %v635 = verf.f32.pop %v631
        %v636 = verf.f32.pop %v632
        %v637 = verf.f32.pop %v633
        %v638 = verf.f32.pop %v634
        %v639 = vadd.f32 %v635, 1.0
        %v640 = vadd.f32 %v636, 1.0
        %v641 = vadd.f32 %v637, 1.0
        %v642 = vadd.f32 %v638, 1.0
        %v643 = vmul.f32 %v627, %v639
        %v644 = vmul.f32 %v628, %v640
        %v645 = vmul.f32 %v629, %v641
        %v646 = vmul.f32 %v630, %v642
        %v647 = vld [vmem:[#allocation2] sm:$0xff]
        %v648 = vld [vmem:[%s387] sm:$0xff]
        %v649 = vld [vmem:[%s387 + $0x8] sm:$0xff]
        %v650 = vld [vmem:[%s387 + $0x10] sm:$0xff]
        %v651 = vld [vmem:[%s387 + $0x18] sm:$0xff]
        %v652 = vld [vmem:[%s387 + $0x20] sm:$0xff]
        %v653 = vld [vmem:[%s387 + $0x28] sm:$0xff]
        %v654 = vld [vmem:[%s387 + $0x30] sm:$0xff]
        %v655 = vld [vmem:[%s387 + $0x38] sm:$0xff]
        %v656 = vld [vmem:[%s387 + $0x40] sm:$0xff]
        %v657 = vld [vmem:[%s387 + $0x48] sm:$0xff]
        %v658 = vld [vmem:[%s387 + $0x50] sm:$0xff]
        %v659 = vld [vmem:[%s387 + $0x58] sm:$0xff]
        %v660 = vld [vmem:[%s387 + $0x60] sm:$0xff]
        %v661 = vld [vmem:[%s387 + $0x68] sm:$0xff]
        %v662 = vld [vmem:[%s387 + $0x70] sm:$0xff]
        %v663 = vld [vmem:[%s387 + $0x78] sm:$0xff]
        %v664 = vld [vmem:[%s387 + $0x80] sm:$0xff]
        %v665 = vld [vmem:[%s387 + $0x88] sm:$0xff]
        %v666 = vld [vmem:[%s387 + $0x90] sm:$0xff]
        %v667 = vld [vmem:[%s387 + $0x98] sm:$0xff]
        %v668 = vld [vmem:[%s387 + $0xa0] sm:$0xff]
        %v669 = vld [vmem:[%s387 + $0xa8] sm:$0xff]
        %v670 = vld [vmem:[%s387 + $0xb0] sm:$0xff]
        %v671 = vld [vmem:[%s387 + $0xb8] sm:$0xff]
        %v672 = vld [vmem:[%s387 + $0xc0] sm:$0xff]
        %v673 = vld [vmem:[%s387 + $0xc8] sm:$0xff]
        %v674 = vld [vmem:[%s387 + $0xd0] sm:$0xff]
        %v675 = vld [vmem:[%s387 + $0xd8] sm:$0xff]
        %v676 = vld [vmem:[%s387 + $0xe0] sm:$0xff]
        %v677 = vld [vmem:[%s387 + $0xe8] sm:$0xff]
        %v678 = vld [vmem:[%s387 + $0xf0] sm:$0xff]
        %v679 = vld [vmem:[%s387 + $0xf8] sm:$0xff]
        %v680 = vld [vmem:[%s387 + $0x100] sm:$0xff]
        %v681 = vld [vmem:[%s387 + $0x108] sm:$0xff]
        %v682 = vld [vmem:[%s387 + $0x110] sm:$0xff]
        %v683 = vld [vmem:[%s387 + $0x118] sm:$0xff]
        %v684 = vld [vmem:[%s387 + $0x120] sm:$0xff]
        %v685 = vld [vmem:[%s387 + $0x128] sm:$0xff]
        %v686 = vld [vmem:[%s387 + $0x130] sm:$0xff]
        %v687 = vld [vmem:[%s387 + $0x138] sm:$0xff]
        %v688 = vld [vmem:[%s387 + $0x140] sm:$0xff]
        %v689 = vld [vmem:[%s387 + $0x148] sm:$0xff]
        %v690 = vld [vmem:[%s387 + $0x150] sm:$0xff]
        %v691 = vld [vmem:[%s387 + $0x158] sm:$0xff]
        %v692 = vld [vmem:[%s387 + $0x160] sm:$0xff]
        %v693 = vld [vmem:[%s387 + $0x168] sm:$0xff]
        %v694 = vld [vmem:[%s387 + $0x170] sm:$0xff]
        %v695 = vld [vmem:[%s387 + $0x178] sm:$0xff]
        %v696 = vld [vmem:[%s387 + $0x180] sm:$0xff]
        %v697 = vld [vmem:[%s387 + $0x188] sm:$0xff]
        %v698 = vld [vmem:[%s387 + $0x190] sm:$0xff]
        %v699 = vld [vmem:[%s387 + $0x198] sm:$0xff]
        %v700 = vld [vmem:[%s387 + $0x1a0] sm:$0xff]
        %v701 = vld [vmem:[%s387 + $0x1a8] sm:$0xff]
        %v702 = vld [vmem:[%s387 + $0x1b0] sm:$0xff]
        %v703 = vld [vmem:[%s387 + $0x1b8] sm:$0xff]
        %v704 = vld [vmem:[%s387 + $0x1c0] sm:$0xff]
        %v705 = vld [vmem:[%s387 + $0x1c8] sm:$0xff]
        %v706 = vld [vmem:[%s387 + $0x1d0] sm:$0xff]
        %v707 = vld [vmem:[%s387 + $0x1d8] sm:$0xff]
        %v708 = vld [vmem:[%s387 + $0x1e0] sm:$0xff]
        %v709 = vld [vmem:[%s387 + $0x1e8] sm:$0xff]
        %v710 = vld [vmem:[%s387 + $0x1f0] sm:$0xff]
        %v711 = vld [vmem:[%s387 + $0x1f8] sm:$0xff]
        %712 = vmatprep.subr.mxu0 0.0
        %713 = vmatpush1.msra.mxu0 %v663
        %714 = vmatprep.subr.mxu0 0.0
        %715 = vmatpush1.msra.mxu0 %v662
        %716 = vmatprep.subr.mxu0 0.0
        %717 = vmatpush1.msra.mxu0 %v661
        %718 = vmatprep.subr.mxu0 0.0
        %719 = vmatpush1.msra.mxu0 %v660
        %720 = vmatprep.subr.mxu0 0.0
        %721 = vmatpush1.msra.mxu0 %v659
        %722 = vmatprep.subr.mxu0 0.0
        %723 = vmatpush1.msra.mxu0 %v658
        %724 = vmatprep.subr.mxu0 0.0
        %725 = vmatpush1.msra.mxu0 %v657
        %726 = vmatprep.subr.mxu0 0.0
        %727 = vmatpush1.msra.mxu0 %v656
        %728 = vmatprep.subr.mxu0 0.0
        %729 = vmatpush1.msra.mxu0 %v655
        %730 = vmatprep.subr.mxu0 0.0
        %731 = vmatpush1.msra.mxu0 %v654
        %732 = vmatprep.subr.mxu0 0.0
        %733 = vmatpush1.msra.mxu0 %v653
        %734 = vmatprep.subr.mxu0 0.0
        %735 = vmatpush1.msra.mxu0 %v652
        %736 = vmatprep.subr.mxu0 0.0
        %737 = vmatpush1.msra.mxu0 %v651
        %738 = vmatprep.subr.mxu0 0.0
        %739 = vmatpush1.msra.mxu0 %v650
        %740 = vmatprep.subr.mxu0 0.0
        %741 = vmatpush1.msra.mxu0 %v649
        %742 = vmatprep.subr.mxu0 0.0
        %743 = vmatpush1.msra.mxu0 %v648
        %744 = vmatprep.subr.mxu0 0.0
        %745 = vmatpush2.msra.mxu0 %v679
        %746 = vmatprep.subr.mxu0 0.0
        %747 = vmatpush2.msra.mxu0 %v678
        %748 = vmatprep.subr.mxu0 0.0
        %749 = vmatpush2.msra.mxu0 %v677
        %750 = vmatprep.subr.mxu0 0.0
        %751 = vmatpush2.msra.mxu0 %v676
        %752 = vmatprep.subr.mxu0 0.0
        %753 = vmatpush2.msra.mxu0 %v675
        %754 = vmatprep.subr.mxu0 0.0
        %755 = vmatpush2.msra.mxu0 %v674
        %756 = vmatprep.subr.mxu0 0.0
        %757 = vmatpush2.msra.mxu0 %v673
        %758 = vmatprep.subr.mxu0 0.0
        %759 = vmatpush2.msra.mxu0 %v672
        %760 = vmatprep.subr.mxu0 0.0
        %761 = vmatpush2.msra.mxu0 %v671
        %762 = vmatprep.subr.mxu0 0.0
        %763 = vmatpush2.msra.mxu0 %v670
        %764 = vmatprep.subr.mxu0 0.0
        %765 = vmatpush2.msra.mxu0 %v669
        %766 = vmatprep.subr.mxu0 0.0
        %767 = vmatpush2.msra.mxu0 %v668
        %768 = vmatprep.subr.mxu0 0.0
        %769 = vmatpush2.msra.mxu0 %v667
        %770 = vmatprep.subr.mxu0 0.0
        %771 = vmatpush2.msra.mxu0 %v666
        %772 = vmatprep.subr.mxu0 0.0
        %773 = vmatpush2.msra.mxu0 %v665
        %774 = vmatprep.subr.mxu0 0.0
        %775 = vmatpush2.msra.mxu0 %v664
        %776 = vmatprep.mubr.f32.mxu0 %v644
        %777 = vmatmul.mubr.f32.gmra.mxu0 %v643
        %v778 = vpop.f32.mrf.mxu0
        %v779 = vadd.f32 0.0, %v778
        %v780 = vpop.f32.mrf.mxu0
        %781 = vdwg.mxu0
        %782 = vmatprep.subr.mxu0 0.0
        %783 = vmatpush1.msra.mxu0 %v695
        %784 = vmatprep.subr.mxu0 0.0
        %785 = vmatpush1.msra.mxu0 %v694
        %786 = vmatprep.subr.mxu0 0.0
        %787 = vmatpush1.msra.mxu0 %v693
        %788 = vmatprep.subr.mxu0 0.0
        %789 = vmatpush1.msra.mxu0 %v692
        %790 = vmatprep.subr.mxu0 0.0
        %791 = vmatpush1.msra.mxu0 %v691
        %792 = vmatprep.subr.mxu0 0.0
        %793 = vmatpush1.msra.mxu0 %v690
        %794 = vmatprep.subr.mxu0 0.0
        %795 = vmatpush1.msra.mxu0 %v689
        %796 = vmatprep.subr.mxu0 0.0
        %797 = vmatpush1.msra.mxu0 %v688
        %798 = vmatprep.subr.mxu0 0.0
        %799 = vmatpush1.msra.mxu0 %v687
        %800 = vmatprep.subr.mxu0 0.0
        %801 = vmatpush1.msra.mxu0 %v686
        %802 = vmatprep.subr.mxu0 0.0
        %803 = vmatpush1.msra.mxu0 %v685
        %804 = vmatprep.subr.mxu0 0.0
        %805 = vmatpush1.msra.mxu0 %v684
        %806 = vmatprep.subr.mxu0 0.0
        %807 = vmatpush1.msra.mxu0 %v683
        %808 = vmatprep.subr.mxu0 0.0
        %809 = vmatpush1.msra.mxu0 %v682
        %810 = vmatprep.subr.mxu0 0.0
        %811 = vmatpush1.msra.mxu0 %v681
        %812 = vmatprep.subr.mxu0 0.0
        %813 = vmatpush1.msra.mxu0 %v680
        %814 = vmatprep.subr.mxu0 0.0
        %815 = vmatpush2.msra.mxu0 %v711
        %816 = vmatprep.subr.mxu0 0.0
        %817 = vmatpush2.msra.mxu0 %v710
        %818 = vmatprep.subr.mxu0 0.0
        %819 = vmatpush2.msra.mxu0 %v709
        %820 = vmatprep.subr.mxu0 0.0
        %821 = vmatpush2.msra.mxu0 %v708
        %822 = vmatprep.subr.mxu0 0.0
        %823 = vmatpush2.msra.mxu0 %v707
        %824 = vmatprep.subr.mxu0 0.0
        %825 = vmatpush2.msra.mxu0 %v706
        %826 = vmatprep.subr.mxu0 0.0
        %827 = vmatpush2.msra.mxu0 %v705
        %828 = vmatprep.subr.mxu0 0.0
        %829 = vmatpush2.msra.mxu0 %v704
        %830 = vmatprep.subr.mxu0 0.0
        %831 = vmatpush2.msra.mxu0 %v703
        %832 = vmatprep.subr.mxu0 0.0
        %833 = vmatpush2.msra.mxu0 %v702
        %834 = vmatprep.subr.mxu0 0.0
        %835 = vmatpush2.msra.mxu0 %v701
        %836 = vmatprep.subr.mxu0 0.0
        %837 = vmatpush2.msra.mxu0 %v700
        %838 = vmatprep.subr.mxu0 0.0
        %839 = vmatpush2.msra.mxu0 %v699
        %840 = vmatprep.subr.mxu0 0.0
        %841 = vmatpush2.msra.mxu0 %v698
        %842 = vmatprep.subr.mxu0 0.0
        %843 = vmatpush2.msra.mxu0 %v697
        %844 = vmatprep.subr.mxu0 0.0
        %845 = vmatpush2.msra.mxu0 %v696
        %846 = vmatprep.mubr.f32.mxu0 %v646
        %847 = vmatmul.mubr.f32.gmra.mxu0 %v645
        %v848 = vpop.f32.mrf.mxu0
        %v849 = vadd.f32 %v779, %v848
        %v850 = vpop.f32.mrf.mxu0
        %851 = vdwg.mxu0
        %v852 = vadd.f32 %v647, %v849
        %853 = vst [vmem:[#allocation2] sm:$0xff] %v852
        // Predicated region
        $region57: #{bert_encoder_ffn_tucker_forward.3} parent=51 // pred_check
          %p854 = pneg %p393
        $region58: #{bert_encoder_ffn_tucker_forward.3} parent=51 // pred_check_branch
          %856 = sbr.rel (%p854) target = $region60
        $region59: #{bert_encoder_ffn_tucker_forward.3} parent=51 // pred_region
          %v857 = vld [vmem:[#allocation2] sm:$0xff]
          %v858 = vld [vmem:[%s4] sm:$0x1]
          %v860 = vlaneseq
          %v861 = vshrl.u32 %v860, 7
          %v862 = vsub.s32 0, %v861
          %v863 = vrot.slane %v858, %v862
          %v865 = vadd.f32 %v857, %v863
          %v866 = vld [vmem:[%s392] sm:$0xff]
          %v867 = vadd.f32 %v865, %v866
          %868 = vadd.xlane.f32.xlu0 %v867
          %v869 = vpop.xlane.xlu0 %868
          %v870 = vmul.f32 %v867, %v867
          %871 = vadd.xlane.f32.xlu0 %v870
          %v872 = vpop.xlane.xlu0 %871
          %v873 = vmul.f32 %v869, 0.0078125
          %v874 = vmul.f32 %v872, 0.0078125
          %v875 = vmul.f32 %v873, %v873
          %v876 = vsub.f32 %v874, %v875
          %v877 = vmax.f32 %v876, 0.0
          %v878 = vadd.f32 %v877, 1e-12
          %v879 = vrsqrt.pop %v878
          %v880 = vsub.f32 %v867, %v873
          %v881 = vmul.f32 %v880, %v879
          %v882 = vld [vmem:[%s6] sm:$0x1]
          %v884 = vlaneseq
          %v885 = vshrl.u32 %v884, 7
          %v886 = vsub.s32 0, %v885
          %v887 = vrot.slane %v882, %v886
          %v889 = vmul.f32 %v881, %v887
          %v890 = vld [vmem:[%s7] sm:$0x1]
          %v892 = vlaneseq
          %v893 = vshrl.u32 %v892, 7
          %v894 = vsub.s32 0, %v893
          %v895 = vrot.slane %v890, %v894
          %v897 = vadd.f32 %v889, %v895
          %898 = vst [vmem:[%s367] sm:$0xff] %v897
        $region60: #{bert_encoder_ffn_tucker_forward.3} parent=51 // pred_fallthru
          _
        %s899 = sand.u32 %s235, 1
        %s900 = scalar_lea.sflag [#allocation4], %s899
        %s901 = sand.u32 %s235, 1
        %s902 = smul.addr %s901, 8
        %s903 = scalar_lea.vmem [#allocation3], %s902
        // Predicated region
        $region61: #{bert_encoder_ffn_tucker_forward.3} parent=51 // pred_check
          %p904 = pneg %p245
        $region62: #{bert_encoder_ffn_tucker_forward.3} parent=51 // pred_check_branch
          %906 = sbr.rel (%p904) target = $region64
        $region63: #{bert_encoder_ffn_tucker_forward.3} parent=51 // pred_region
          %s908 = ssub.s32 128, 128
          %909 = vsyncadd %s900, %s908
          %s910 = smul.addr %s26, 128
          %s911 = scalar_lea.hbm %s8, %s910
          %s913 = sshll.u32 %s903, 4
          %s914 = int_to_ptr.vmem [resolvable:$true] %s913
          %916 = dma.vmem_to_hbm [thread:$0]  %s914, 128, %s911, %s900
        $region64: #{bert_encoder_ffn_tucker_forward.3} parent=51 // pred_fallthru
          _
      $region52: #{bert_encoder_ffn_tucker_forward.3} parent=5 // pred_fallthru
        _
      %p917 = scmp.le.s32.totalorder 2, %s17
      // Predicated region
      $region65: #{bert_encoder_ffn_tucker_forward.3} parent=5 // pred_check
        %p918 = pneg %p917
      $region66: #{bert_encoder_ffn_tucker_forward.3} parent=5 // pred_check_branch
        %920 = sbr.rel (%p918) target = $region68
      $region67: #{bert_encoder_ffn_tucker_forward.3} parent=5 // pred_region
        %s921 = ssub.s32 %s17, 2
        // Predicated region
        $region69: #{bert_encoder_ffn_tucker_forward.3} parent=67 // pred_check
          %p922 = pneg %p251
        $region70: #{bert_encoder_ffn_tucker_forward.3} parent=67 // pred_check_branch
          %924 = sbr.rel (%p922) target = $region72
        $region71: #{bert_encoder_ffn_tucker_forward.3} parent=67 // pred_region
          %s925 = sand.u32 %s236, 1
          %s926 = scalar_lea.sflag [#allocation4], %s925
          %s927 = sand.u32 %s236, 1
          %s928 = smul.addr %s927, 8
          %s929 = scalar_lea.vmem [#allocation3], %s928
          %930 = dma.done %s926, 128
        $region72: #{bert_encoder_ffn_tucker_forward.3} parent=67 // pred_fallthru
          _
      $region68: #{bert_encoder_ffn_tucker_forward.3} parent=5 // pred_fallthru
        _
    $region6: #{bert_encoder_ffn_tucker_forward.3} parent=1 // loop_footer
      %s21 = sadd.s32 1, %s17
    $region7: #{bert_encoder_ffn_tucker_forward.3} parent=1 // loop_footer_branch
      %16 = sbr.rel target = $region3
    $region8: #{bert_encoder_ffn_tucker_forward.3} parent=1 // loop_exit
      _
    %931 = vsyncpa [#allocation4], 1
    %s932 = scalar_lea.sflag [#allocation4], 1
    %933 = vsyncpa %s932, 1

// kernel: bert_encoder_ffn_tucker_forward.2
$region0: #{bert_encoder_ffn_tucker_forward.2}
  #allocation0 [shape = 'u32[]', space=smem, size = 0x4, offset = 0x4, fixed_abs, tag = 'smem constant byte address 0x4 - core index']
  #allocation1 [shape = 'u32[144,128]{1,0:T(1,128)}', space=vmem, size = 0x12000, scoped, tag = 'internal scratch']
  #allocation2 [shape = 'f32[8,128]{1,0:T(8,128)}', space=vmem, size = 0x1000, scoped, tag = 'scratch operand']
  %s0 = inlined_call_operand.vmem [shape: f32[16,128], index: 0, kind: input, shape index: {}, may-alias: {0,5}]
  %s1 = inlined_call_operand.vmem [shape: f32[128,512], index: 1, kind: input, shape index: {}]
  %s2 = inlined_call_operand.vmem [shape: f32[1,512], index: 2, kind: input, shape index: {}]
  %s3 = inlined_call_operand.vmem [shape: f32[512,128], index: 3, kind: input, shape index: {}]
  %s4 = inlined_call_operand.vmem [shape: f32[1,128], index: 4, kind: input, shape index: {}]
  %s5 = inlined_call_operand.vmem [shape: f32[16,128], index: 5, kind: input, shape index: {}, may-alias: {0,5}]
  %s6 = inlined_call_operand.vmem [shape: f32[1,128], index: 6, kind: input, shape index: {}]
  %s7 = inlined_call_operand.vmem [shape: f32[1,128], index: 7, kind: input, shape index: {}]
  %s8 = inlined_call_operand.vmem [shape: f32[16,128], index: 8, kind: output, shape index: {}]
  %s9 = sld [smem:[#allocation0]]
  $region73: #{bert_encoder_ffn_tucker_forward.2} parent=0
    _
  %s11 = ssub.s32 1, %s9
  %s12 = scalar_select 0, %s11, %s9
  loop: start=0, step=1, limit=4
  $region2: #{bert_encoder_ffn_tucker_forward.2} parent=0 // loop_pre_header
    _
  $region3: #{bert_encoder_ffn_tucker_forward.2} parent=0 // loop_header
    %s14 = sphi 0, %s18
    %p15 = scmp.ge.s32.totalorder %s14, 4
    %s21 = sphi 0, %s33
    %s22 = sphi 0, %s29
    %s23 = sphi 0, %s21
    %s24 = sphi 0, %s22
    %s25 = sphi 0, %s23
    %s26 = sphi 0, %s24
    %s36 = sphi 0, %s38
    %s39 = sphi 0, %s36
    %s40 = sphi 0, %s39
    %s56 = sphi 0, %s40
    %s62 = sphi 0, %s64
    %s65 = sphi 0, %s62
    %s66 = sphi 0, %s65
    %s82 = sphi 0, %s66
    %s88 = sphi 0, %s90
    %s91 = sphi 0, %s88
    %s92 = sphi 0, %s91
    %s108 = sphi 0, %s92
    %s114 = sphi 0, %s116
    %s117 = sphi 0, %s114
    %s118 = sphi 0, %s117
    %s134 = sphi 0, %s118
    %s138 = sphi 0, %s138
    %s140 = sphi 0, %s138
    %s141 = sphi 0, %s140
    %s155 = sphi 0, %s141
    %s161 = sphi 0, %s163
    %s164 = sphi 0, %s161
    %s165 = sphi 0, %s164
    %s181 = sphi 0, %s165
    %s185 = sphi 0, %s185
    %s187 = sphi 0, %s185
    %s188 = sphi 0, %s187
    %s202 = sphi 0, %s188
    %s206 = sphi 0, %s206
    %s208 = sphi 0, %s206
    %s209 = sphi 0, %s208
    %s223 = sphi 0, %s209
    %s229 = sphi 0, %s231
    %s232 = sphi 0, %s229
    %s233 = sphi 0, %s232
    %s249 = sphi 0, %s233
  $region4: #{bert_encoder_ffn_tucker_forward.2} parent=0 // loop_header_branch
    %17 = sbr.rel (%p15) target = $region8
  $region5: #{bert_encoder_ffn_tucker_forward.2} parent=0 // loop_body
    %s19 = ssub.s32 %s14, 1
    %s20 = ssub.s32 %s14, 2
    %s27 = sadd.s32 1, %s22
    %p28 = scmp.ge.s32.totalorder %s27, 1
    %s29 = scalar_select %p28, 0, %s27
    %s30 = sadd.s32 1, %s21
    %s31 = scalar_select %p28, %s30, %s21
    %p32 = scmp.ge.s32.totalorder %s31, 2
    %s33 = scalar_select %p32, 0, %s31
    %s34 = ssub.s32 %s21, %s33
    %p35 = scmp.eq.s32.totalorder %s34, 0
    %s37 = sadd.s32 %s36, 1
    %s38 = scalar_select %p35, %s36, %s37
    %p41 = pneg %p35
    %p42 = scmp.eq.s32.totalorder %s14, 1
    %p43 = por %p41, %p42
    %p44 = scmp.ne.s32.totalorder %s36, %s39
    %p45 = scmp.eq.s32.totalorder %s14, 0
    %p46 = por %p44, %p45
    %p47 = scmp.ne.s32.totalorder %s36, %s39
    %p48 = scmp.eq.s32.totalorder %s19, 1
    %p49 = por %p47, %p48
    %p50 = scmp.ne.s32.totalorder %s39, %s40
    %p51 = scmp.eq.s32.totalorder %s19, 0
    %p52 = por %p50, %p51
    %p53 = scmp.ne.s32.totalorder %s39, %s40
    %p54 = scmp.eq.s32.totalorder %s20, 1
    %p55 = por %p53, %p54
    %p57 = scmp.ne.s32.totalorder %s40, %s56
    %p58 = scmp.eq.s32.totalorder %s20, 0
    %p59 = por %p57, %p58
    %s60 = ssub.s32 %s22, %s29
    %p61 = scmp.eq.s32.totalorder %s60, 0
    %s63 = sadd.s32 %s62, 1
    %s64 = scalar_select %p61, %s62, %s63
    %p67 = pneg %p61
    %p68 = scmp.eq.s32.totalorder %s14, 1
    %p69 = por %p67, %p68
    %p70 = scmp.ne.s32.totalorder %s62, %s65
    %p71 = scmp.eq.s32.totalorder %s14, 0
    %p72 = por %p70, %p71
    %p73 = scmp.ne.s32.totalorder %s62, %s65
    %p74 = scmp.eq.s32.totalorder %s19, 1
    %p75 = por %p73, %p74
    %p76 = scmp.ne.s32.totalorder %s65, %s66
    %p77 = scmp.eq.s32.totalorder %s19, 0
    %p78 = por %p76, %p77
    %p79 = scmp.ne.s32.totalorder %s65, %s66
    %p80 = scmp.eq.s32.totalorder %s20, 1
    %p81 = por %p79, %p80
    %p83 = scmp.ne.s32.totalorder %s66, %s82
    %p84 = scmp.eq.s32.totalorder %s20, 0
    %p85 = por %p83, %p84
    %s86 = ssub.s32 %s22, %s29
    %p87 = scmp.eq.s32.totalorder %s86, 0
    %s89 = sadd.s32 %s88, 1
    %s90 = scalar_select %p87, %s88, %s89
    %p93 = pneg %p87
    %p94 = scmp.eq.s32.totalorder %s14, 1
    %p95 = por %p93, %p94
    %p96 = scmp.ne.s32.totalorder %s88, %s91
    %p97 = scmp.eq.s32.totalorder %s14, 0
    %p98 = por %p96, %p97
    %p99 = scmp.ne.s32.totalorder %s88, %s91
    %p100 = scmp.eq.s32.totalorder %s19, 1
    %p101 = por %p99, %p100
    %p102 = scmp.ne.s32.totalorder %s91, %s92
    %p103 = scmp.eq.s32.totalorder %s19, 0
    %p104 = por %p102, %p103
    %p105 = scmp.ne.s32.totalorder %s91, %s92
    %p106 = scmp.eq.s32.totalorder %s20, 1
    %p107 = por %p105, %p106
    %p109 = scmp.ne.s32.totalorder %s92, %s108
    %p110 = scmp.eq.s32.totalorder %s20, 0
    %p111 = por %p109, %p110
    %s112 = ssub.s32 %s22, %s29
    %p113 = scmp.eq.s32.totalorder %s112, 0
    %s115 = sadd.s32 %s114, 1
    %s116 = scalar_select %p113, %s114, %s115
    %p119 = pneg %p113
    %p120 = scmp.eq.s32.totalorder %s14, 1
    %p121 = por %p119, %p120
    %p122 = scmp.ne.s32.totalorder %s114, %s117
    %p123 = scmp.eq.s32.totalorder %s14, 0
    %p124 = por %p122, %p123
    %p125 = scmp.ne.s32.totalorder %s114, %s117
    %p126 = scmp.eq.s32.totalorder %s19, 1
    %p127 = por %p125, %p126
    %p128 = scmp.ne.s32.totalorder %s117, %s118
    %p129 = scmp.eq.s32.totalorder %s19, 0
    %p130 = por %p128, %p129
    %p131 = scmp.ne.s32.totalorder %s117, %s118
    %p132 = scmp.eq.s32.totalorder %s20, 1
    %p133 = por %p131, %p132
    %p135 = scmp.ne.s32.totalorder %s118, %s134
    %p136 = scmp.eq.s32.totalorder %s20, 0
    %p137 = por %p135, %p136
    %s139 = sadd.s32 %s138, 1
    %p142 = scmp.eq.s32.totalorder %s14, 1
    %p143 = scmp.ne.s32.totalorder %s138, %s140
    %p144 = scmp.eq.s32.totalorder %s14, 0
    %p145 = por %p143, %p144
    %p146 = scmp.ne.s32.totalorder %s138, %s140
    %p147 = scmp.eq.s32.totalorder %s19, 1
    %p148 = por %p146, %p147
    %p149 = scmp.ne.s32.totalorder %s140, %s141
    %p150 = scmp.eq.s32.totalorder %s19, 0
    %p151 = por %p149, %p150
    %p152 = scmp.ne.s32.totalorder %s140, %s141
    %p153 = scmp.eq.s32.totalorder %s20, 1
    %p154 = por %p152, %p153
    %p156 = scmp.ne.s32.totalorder %s141, %s155
    %p157 = scmp.eq.s32.totalorder %s20, 0
    %p158 = por %p156, %p157
    %s159 = ssub.s32 %s21, %s33
    %p160 = scmp.eq.s32.totalorder %s159, 0
    %s162 = sadd.s32 %s161, 1
    %s163 = scalar_select %p160, %s161, %s162
    %p166 = pneg %p160
    %p167 = scmp.eq.s32.totalorder %s14, 1
    %p168 = por %p166, %p167
    %p169 = scmp.ne.s32.totalorder %s161, %s164
    %p170 = scmp.eq.s32.totalorder %s14, 0
    %p171 = por %p169, %p170
    %p172 = scmp.ne.s32.totalorder %s161, %s164
    %p173 = scmp.eq.s32.totalorder %s19, 1
    %p174 = por %p172, %p173
    %p175 = scmp.ne.s32.totalorder %s164, %s165
    %p176 = scmp.eq.s32.totalorder %s19, 0
    %p177 = por %p175, %p176
    %p178 = scmp.ne.s32.totalorder %s164, %s165
    %p179 = scmp.eq.s32.totalorder %s20, 1
    %p180 = por %p178, %p179
    %p182 = scmp.ne.s32.totalorder %s165, %s181
    %p183 = scmp.eq.s32.totalorder %s20, 0
    %p184 = por %p182, %p183
    %s186 = sadd.s32 %s185, 1
    %p189 = scmp.eq.s32.totalorder %s14, 1
    %p190 = scmp.ne.s32.totalorder %s185, %s187
    %p191 = scmp.eq.s32.totalorder %s14, 0
    %p192 = por %p190, %p191
    %p193 = scmp.ne.s32.totalorder %s185, %s187
    %p194 = scmp.eq.s32.totalorder %s19, 1
    %p195 = por %p193, %p194
    %p196 = scmp.ne.s32.totalorder %s187, %s188
    %p197 = scmp.eq.s32.totalorder %s19, 0
    %p198 = por %p196, %p197
    %p199 = scmp.ne.s32.totalorder %s187, %s188
    %p200 = scmp.eq.s32.totalorder %s20, 1
    %p201 = por %p199, %p200
    %p203 = scmp.ne.s32.totalorder %s188, %s202
    %p204 = scmp.eq.s32.totalorder %s20, 0
    %p205 = por %p203, %p204
    %s207 = sadd.s32 %s206, 1
    %p210 = scmp.eq.s32.totalorder %s14, 1
    %p211 = scmp.ne.s32.totalorder %s206, %s208
    %p212 = scmp.eq.s32.totalorder %s14, 0
    %p213 = por %p211, %p212
    %p214 = scmp.ne.s32.totalorder %s206, %s208
    %p215 = scmp.eq.s32.totalorder %s19, 1
    %p216 = por %p214, %p215
    %p217 = scmp.ne.s32.totalorder %s208, %s209
    %p218 = scmp.eq.s32.totalorder %s19, 0
    %p219 = por %p217, %p218
    %p220 = scmp.ne.s32.totalorder %s208, %s209
    %p221 = scmp.eq.s32.totalorder %s20, 1
    %p222 = por %p220, %p221
    %p224 = scmp.ne.s32.totalorder %s209, %s223
    %p225 = scmp.eq.s32.totalorder %s20, 0
    %p226 = por %p224, %p225
    %s227 = ssub.s32 %s21, %s33
    %p228 = scmp.eq.s32.totalorder %s227, 0
    %s230 = sadd.s32 %s229, 1
    %s231 = scalar_select %p228, %s229, %s230
    %p234 = pneg %p228
    %p235 = scmp.eq.s32.totalorder %s14, 1
    %p236 = por %p234, %p235
    %p237 = scmp.ne.s32.totalorder %s229, %s232
    %p238 = scmp.eq.s32.totalorder %s14, 0
    %p239 = por %p237, %p238
    %p240 = scmp.ne.s32.totalorder %s229, %s232
    %p241 = scmp.eq.s32.totalorder %s19, 1
    %p242 = por %p240, %p241
    %p243 = scmp.ne.s32.totalorder %s232, %s233
    %p244 = scmp.eq.s32.totalorder %s19, 0
    %p245 = por %p243, %p244
    %p246 = scmp.ne.s32.totalorder %s232, %s233
    %p247 = scmp.eq.s32.totalorder %s20, 1
    %p248 = por %p246, %p247
    %p250 = scmp.ne.s32.totalorder %s233, %s249
    %p251 = scmp.eq.s32.totalorder %s20, 0
    %p252 = por %p250, %p251
    %p253 = scmp.le.s32.totalorder 1, %s14
    %p254 = scmp.lt.s32.totalorder %s14, 3
    %p255 = pnand %p253, %p254
    %p256 = pneg %p255
    // Predicated region
    $region9: #{bert_encoder_ffn_tucker_forward.2} parent=5 // pred_check
      _
    $region10: #{bert_encoder_ffn_tucker_forward.2} parent=5 // pred_check_branch
      %258 = sbr.rel (%p255) target = $region12
    $region11: #{bert_encoder_ffn_tucker_forward.2} parent=5 // pred_region
      %s259 = ssub.s32 %s14, 1
      // Predicated region
      $region13: #{bert_encoder_ffn_tucker_forward.2} parent=11 // pred_check
        %p260 = pneg %p78
      $region14: #{bert_encoder_ffn_tucker_forward.2} parent=11 // pred_check_branch
        %262 = sbr.rel (%p260) target = $region16
      $region15: #{bert_encoder_ffn_tucker_forward.2} parent=11 // pred_region
        %s263 = smul.u32 4, %s24
        %p264 = scmp.lt.s32.totalorder %s263, 3
        %s265 = scalar_select %p264, %s263, 3
        %s266 = smul.addr %s265, 8
        %s267 = scalar_lea.vmem %s1, %s266
        %s268 = smul.u32 4, %s24
      $region16: #{bert_encoder_ffn_tucker_forward.2} parent=11 // pred_fallthru
        _
      // Predicated region
      $region17: #{bert_encoder_ffn_tucker_forward.2} parent=11 // pred_check
        %p269 = pneg %p104
      $region18: #{bert_encoder_ffn_tucker_forward.2} parent=11 // pred_check_branch
        %271 = sbr.rel (%p269) target = $region20
      $region19: #{bert_encoder_ffn_tucker_forward.2} parent=11 // pred_region
        %s272 = smul.u32 4, %s24
        %p273 = scmp.lt.s32.totalorder %s272, 3
        %s274 = scalar_select %p273, %s272, 3
        %s275 = scalar_lea.vmem %s2, %s274
        %s276 = smul.u32 4, %s24
      $region20: #{bert_encoder_ffn_tucker_forward.2} parent=11 // pred_fallthru
        _
      // Predicated region
      $region21: #{bert_encoder_ffn_tucker_forward.2} parent=11 // pred_check
        %p277 = pneg %p130
      $region22: #{bert_encoder_ffn_tucker_forward.2} parent=11 // pred_check_branch
        %279 = sbr.rel (%p277) target = $region24
      $region23: #{bert_encoder_ffn_tucker_forward.2} parent=11 // pred_region
        %s280 = smul.u32 64, %s24
        %p281 = scmp.lt.s32.totalorder %s280, 63
        %s282 = scalar_select %p281, %s280, 63
        %s283 = smul.addr %s282, 8
        %s284 = scalar_lea.vmem %s3, %s283
        %s285 = smul.u32 64, %s24
      $region24: #{bert_encoder_ffn_tucker_forward.2} parent=11 // pred_fallthru
        _
      // Predicated region
      $region25: #{bert_encoder_ffn_tucker_forward.2} parent=11 // pred_check
        %p286 = pneg %p151
      $region26: #{bert_encoder_ffn_tucker_forward.2} parent=11 // pred_check_branch
        %288 = sbr.rel (%p286) target = $region28
      $region27: #{bert_encoder_ffn_tucker_forward.2} parent=11 // pred_region
        _
      $region28: #{bert_encoder_ffn_tucker_forward.2} parent=11 // pred_fallthru
        _
      // Predicated region
      $region29: #{bert_encoder_ffn_tucker_forward.2} parent=11 // pred_check
        %p289 = pneg %p198
      $region30: #{bert_encoder_ffn_tucker_forward.2} parent=11 // pred_check_branch
        %291 = sbr.rel (%p289) target = $region32
      $region31: #{bert_encoder_ffn_tucker_forward.2} parent=11 // pred_region
        _
      $region32: #{bert_encoder_ffn_tucker_forward.2} parent=11 // pred_fallthru
        _
      // Predicated region
      $region33: #{bert_encoder_ffn_tucker_forward.2} parent=11 // pred_check
        %p292 = pneg %p219
      $region34: #{bert_encoder_ffn_tucker_forward.2} parent=11 // pred_check_branch
        %294 = sbr.rel (%p292) target = $region36
      $region35: #{bert_encoder_ffn_tucker_forward.2} parent=11 // pred_region
        _
      $region36: #{bert_encoder_ffn_tucker_forward.2} parent=11 // pred_fallthru
        _
    $region12: #{bert_encoder_ffn_tucker_forward.2} parent=5 // pred_fallthru
      _
    %p295 = scmp.lt.s32.totalorder %s14, 2
    // Predicated region
    $region37: #{bert_encoder_ffn_tucker_forward.2} parent=5 // pred_check
      %p296 = pneg %p295
    $region38: #{bert_encoder_ffn_tucker_forward.2} parent=5 // pred_check_branch
      %298 = sbr.rel (%p296) target = $region40
    $region39: #{bert_encoder_ffn_tucker_forward.2} parent=5 // pred_region
      // Predicated region
      $region41: #{bert_encoder_ffn_tucker_forward.2} parent=39 // pred_check
        %p299 = pneg %p46
      $region42: #{bert_encoder_ffn_tucker_forward.2} parent=39 // pred_check_branch
        %301 = sbr.rel (%p299) target = $region44
      $region43: #{bert_encoder_ffn_tucker_forward.2} parent=39 // pred_region
        %p302 = scmp.lt.s32.totalorder %s21, 1
        %s303 = scalar_select %p302, %s21, 1
        %s304 = smul.addr %s303, 8
        %s305 = scalar_lea.vmem %s0, %s304
      $region44: #{bert_encoder_ffn_tucker_forward.2} parent=39 // pred_fallthru
        _
      // Predicated region
      $region45: #{bert_encoder_ffn_tucker_forward.2} parent=39 // pred_check
        %p306 = pneg %p171
      $region46: #{bert_encoder_ffn_tucker_forward.2} parent=39 // pred_check_branch
        %308 = sbr.rel (%p306) target = $region48
      $region47: #{bert_encoder_ffn_tucker_forward.2} parent=39 // pred_region
        %p309 = scmp.lt.s32.totalorder %s21, 1
        %s310 = scalar_select %p309, %s21, 1
        %s311 = smul.addr %s310, 8
        %s312 = scalar_lea.vmem %s5, %s311
      $region48: #{bert_encoder_ffn_tucker_forward.2} parent=39 // pred_fallthru
        _
    $region40: #{bert_encoder_ffn_tucker_forward.2} parent=5 // pred_fallthru
      _
    %p313 = scmp.le.s32.totalorder 1, %s14
    %p314 = scmp.lt.s32.totalorder %s14, 3
    %p315 = pnand %p313, %p314
    %p316 = pneg %p315
    // Predicated region
    $region49: #{bert_encoder_ffn_tucker_forward.2} parent=5 // pred_check
      _
    $region50: #{bert_encoder_ffn_tucker_forward.2} parent=5 // pred_check_branch
      %318 = sbr.rel (%p315) target = $region52
    $region51: #{bert_encoder_ffn_tucker_forward.2} parent=5 // pred_region
      %s319 = ssub.s32 %s14, 1
      %p320 = scmp.lt.s32.totalorder %s23, 1
      %s321 = scalar_select %p320, %s23, 1
      %s322 = smul.addr %s321, 8
      %s323 = scalar_lea.vmem %s0, %s322
      %p324 = pneg %p52
      %p325 = pneg %p49
      %s326 = smul.u32 4, %s24
      %p327 = scmp.lt.s32.totalorder %s326, 3
      %s328 = scalar_select %p327, %s326, 3
      %s329 = smul.addr %s328, 8
      %s330 = scalar_lea.vmem %s1, %s329
      %p331 = pneg %p78
      %p332 = pneg %p75
      %s333 = smul.u32 4, %s24
      %p334 = scmp.lt.s32.totalorder %s333, 3
      %s335 = scalar_select %p334, %s333, 3
      %s336 = scalar_lea.vmem %s2, %s335
      %p337 = pneg %p104
      %p338 = pneg %p101
      %s339 = smul.u32 64, %s24
      %p340 = scmp.lt.s32.totalorder %s339, 63
      %s341 = scalar_select %p340, %s339, 63
      %s342 = smul.addr %s341, 8
      %s343 = scalar_lea.vmem %s3, %s342
      %p344 = pneg %p130
      %p345 = pneg %p127
      %p346 = pneg %p151
      %p347 = pneg %p148
      %p348 = scmp.lt.s32.totalorder %s23, 1
      %s349 = scalar_select %p348, %s23, 1
      %s350 = smul.addr %s349, 8
      %s351 = scalar_lea.vmem %s5, %s350
      %p352 = pneg %p177
      %p353 = pneg %p174
      %p354 = pneg %p198
      %p355 = pneg %p195
      %p356 = pneg %p219
      %p357 = pneg %p216
      %p358 = pneg %p245
      %p359 = pneg %p242
      %p360 = scmp.lt.s32.totalorder %s23, 1
      %s361 = scalar_select %p360, %s23, 1
      %s362 = smul.addr %s361, 8
      %s363 = scalar_lea.vmem %s8, %s362
      %p364 = scmp.lt.s32.totalorder %s23, 1
      %s365 = scalar_select %p364, %s23, 1
      %s366 = smul.addr %s365, 8
      %s367 = scalar_lea.vmem %s0, %s366
      %s368 = smul.u32 4, %s24
      %p369 = scmp.lt.s32.totalorder %s368, 3
      %s370 = scalar_select %p369, %s368, 3
      %s371 = smul.addr %s370, 8
      %s372 = scalar_lea.vmem %s1, %s371
      %s373 = smul.u32 4, %s24
      %s374 = smul.u32 4, %s24
      %p375 = scmp.lt.s32.totalorder %s374, 3
      %s376 = scalar_select %p375, %s374, 3
      %s377 = scalar_lea.vmem %s2, %s376
      %s378 = smul.u32 4, %s24
      %s379 = smul.u32 64, %s24
      %p380 = scmp.lt.s32.totalorder %s379, 63
      %s381 = scalar_select %p380, %s379, 63
      %s382 = smul.addr %s381, 8
      %s383 = scalar_lea.vmem %s3, %s382
      %s384 = smul.u32 64, %s24
      %p385 = scmp.lt.s32.totalorder %s23, 1
      %s386 = scalar_select %p385, %s23, 1
      %s387 = smul.addr %s386, 8
      %s388 = scalar_lea.vmem %s5, %s387
      %p389 = scmp.lt.s32.totalorder %s23, 1
      %s390 = scalar_select %p389, %s23, 1
      %s391 = smul.addr %s390, 8
      %s392 = scalar_lea.vmem %s8, %s391
      %p393 = scmp.eq.s32.totalorder %s24, 0
      // Predicated region
      $region53: #{bert_encoder_ffn_tucker_forward.2} parent=51 // pred_check
        %p394 = pneg %p393
      $region54: #{bert_encoder_ffn_tucker_forward.2} parent=51 // pred_check_branch
        %396 = sbr.rel (%p394) target = $region56
      $region55: #{bert_encoder_ffn_tucker_forward.2} parent=51 // pred_region
        %397 = vst [vmem:[#allocation2] sm:$0xff] 0.0
      $region56: #{bert_encoder_ffn_tucker_forward.2} parent=51 // pred_fallthru
        _
      %v398 = vld [vmem:[%s367] sm:$0xff]
      %v399 = vld [vmem:[%s372] sm:$0xff]
      %v400 = vld [vmem:[%s372 + $0x8] sm:$0xff]
      %v401 = vld [vmem:[%s372 + $0x10] sm:$0xff]
      %v402 = vld [vmem:[%s372 + $0x18] sm:$0xff]
      %v403 = vld [vmem:[%s372 + $0x20] sm:$0xff]
      %v404 = vld [vmem:[%s372 + $0x28] sm:$0xff]
      %v405 = vld [vmem:[%s372 + $0x30] sm:$0xff]
      %v406 = vld [vmem:[%s372 + $0x38] sm:$0xff]
      %v407 = vld [vmem:[%s372 + $0x40] sm:$0xff]
      %v408 = vld [vmem:[%s372 + $0x48] sm:$0xff]
      %v409 = vld [vmem:[%s372 + $0x50] sm:$0xff]
      %v410 = vld [vmem:[%s372 + $0x58] sm:$0xff]
      %v411 = vld [vmem:[%s372 + $0x60] sm:$0xff]
      %v412 = vld [vmem:[%s372 + $0x68] sm:$0xff]
      %v413 = vld [vmem:[%s372 + $0x70] sm:$0xff]
      %v414 = vld [vmem:[%s372 + $0x78] sm:$0xff]
      %v415 = vld [vmem:[%s372 + $0x80] sm:$0xff]
      %v416 = vld [vmem:[%s372 + $0x88] sm:$0xff]
      %v417 = vld [vmem:[%s372 + $0x90] sm:$0xff]
      %v418 = vld [vmem:[%s372 + $0x98] sm:$0xff]
      %v419 = vld [vmem:[%s372 + $0xa0] sm:$0xff]
      %v420 = vld [vmem:[%s372 + $0xa8] sm:$0xff]
      %v421 = vld [vmem:[%s372 + $0xb0] sm:$0xff]
      %v422 = vld [vmem:[%s372 + $0xb8] sm:$0xff]
      %v423 = vld [vmem:[%s372 + $0xc0] sm:$0xff]
      %v424 = vld [vmem:[%s372 + $0xc8] sm:$0xff]
      %v425 = vld [vmem:[%s372 + $0xd0] sm:$0xff]
      %v426 = vld [vmem:[%s372 + $0xd8] sm:$0xff]
      %v427 = vld [vmem:[%s372 + $0xe0] sm:$0xff]
      %v428 = vld [vmem:[%s372 + $0xe8] sm:$0xff]
      %v429 = vld [vmem:[%s372 + $0xf0] sm:$0xff]
      %v430 = vld [vmem:[%s372 + $0xf8] sm:$0xff]
      %v431 = vld [vmem:[%s372 + $0x100] sm:$0xff]
      %v432 = vld [vmem:[%s372 + $0x108] sm:$0xff]
      %v433 = vld [vmem:[%s372 + $0x110] sm:$0xff]
      %v434 = vld [vmem:[%s372 + $0x118] sm:$0xff]
      %v435 = vld [vmem:[%s372 + $0x120] sm:$0xff]
      %v436 = vld [vmem:[%s372 + $0x128] sm:$0xff]
      %v437 = vld [vmem:[%s372 + $0x130] sm:$0xff]
      %v438 = vld [vmem:[%s372 + $0x138] sm:$0xff]
      %v439 = vld [vmem:[%s372 + $0x140] sm:$0xff]
      %v440 = vld [vmem:[%s372 + $0x148] sm:$0xff]
      %v441 = vld [vmem:[%s372 + $0x150] sm:$0xff]
      %v442 = vld [vmem:[%s372 + $0x158] sm:$0xff]
      %v443 = vld [vmem:[%s372 + $0x160] sm:$0xff]
      %v444 = vld [vmem:[%s372 + $0x168] sm:$0xff]
      %v445 = vld [vmem:[%s372 + $0x170] sm:$0xff]
      %v446 = vld [vmem:[%s372 + $0x178] sm:$0xff]
      %v447 = vld [vmem:[%s372 + $0x180] sm:$0xff]
      %v448 = vld [vmem:[%s372 + $0x188] sm:$0xff]
      %v449 = vld [vmem:[%s372 + $0x190] sm:$0xff]
      %v450 = vld [vmem:[%s372 + $0x198] sm:$0xff]
      %v451 = vld [vmem:[%s372 + $0x1a0] sm:$0xff]
      %v452 = vld [vmem:[%s372 + $0x1a8] sm:$0xff]
      %v453 = vld [vmem:[%s372 + $0x1b0] sm:$0xff]
      %v454 = vld [vmem:[%s372 + $0x1b8] sm:$0xff]
      %v455 = vld [vmem:[%s372 + $0x1c0] sm:$0xff]
      %v456 = vld [vmem:[%s372 + $0x1c8] sm:$0xff]
      %v457 = vld [vmem:[%s372 + $0x1d0] sm:$0xff]
      %v458 = vld [vmem:[%s372 + $0x1d8] sm:$0xff]
      %v459 = vld [vmem:[%s372 + $0x1e0] sm:$0xff]
      %v460 = vld [vmem:[%s372 + $0x1e8] sm:$0xff]
      %v461 = vld [vmem:[%s372 + $0x1f0] sm:$0xff]
      %v462 = vld [vmem:[%s372 + $0x1f8] sm:$0xff]
      %v463 = vld [vmem:[%s377] sm:$0xf]
      %v465 = vlaneseq
      %v466 = vshrl.u32 %v465, 7
      %v467 = vsub.s32 0, %v466
      %v468 = vrot.slane %v463, %v467
      %v469 = vlaneseq
      %v470 = vshrl.u32 %v469, 7
      %v471 = vsub.s32 1, %v470
      %v472 = vrot.slane %v463, %v471
      %v473 = vlaneseq
      %v474 = vshrl.u32 %v473, 7
      %v475 = vsub.s32 2, %v474
      %v476 = vrot.slane %v463, %v475
      %v477 = vlaneseq
      %v478 = vshrl.u32 %v477, 7
      %v479 = vsub.s32 3, %v478
      %v480 = vrot.slane %v463, %v479
      %485 = vmatprep.subr.mxu0 %v460
      %486 = vmatpush1.msra.mxu0 %v459
      %487 = vmatprep.subr.mxu0 %v456
      %488 = vmatpush1.msra.mxu0 %v455
      %489 = vmatprep.subr.mxu0 %v452
      %490 = vmatpush1.msra.mxu0 %v451
      %491 = vmatprep.subr.mxu0 %v448
      %492 = vmatpush1.msra.mxu0 %v447
      %493 = vmatprep.subr.mxu0 %v444
      %494 = vmatpush1.msra.mxu0 %v443
      %495 = vmatprep.subr.mxu0 %v440
      %496 = vmatpush1.msra.mxu0 %v439
      %497 = vmatprep.subr.mxu0 %v436
      %498 = vmatpush1.msra.mxu0 %v435
      %499 = vmatprep.subr.mxu0 %v432
      %500 = vmatpush1.msra.mxu0 %v431
      %501 = vmatprep.subr.mxu0 %v428
      %502 = vmatpush1.msra.mxu0 %v427
      %503 = vmatprep.subr.mxu0 %v424
      %504 = vmatpush1.msra.mxu0 %v423
      %505 = vmatprep.subr.mxu0 %v420
      %506 = vmatpush1.msra.mxu0 %v419
      %507 = vmatprep.subr.mxu0 %v416
      %508 = vmatpush1.msra.mxu0 %v415
      %509 = vmatprep.subr.mxu0 %v412
      %510 = vmatpush1.msra.mxu0 %v411
      %511 = vmatprep.subr.mxu0 %v408
      %512 = vmatpush1.msra.mxu0 %v407
      %513 = vmatprep.subr.mxu0 %v404
      %514 = vmatpush1.msra.mxu0 %v403
      %515 = vmatprep.subr.mxu0 %v400
      %516 = vmatpush1.msra.mxu0 %v399
      %517 = vmatprep.subr.mxu0 0.0
      %518 = vmatpush2.msra.mxu0 0.0
      %519 = vmatprep.subr.mxu0 0.0
      %520 = vmatpush2.msra.mxu0 0.0
      %521 = vmatprep.subr.mxu0 0.0
      %522 = vmatpush2.msra.mxu0 0.0
      %523 = vmatprep.subr.mxu0 0.0
      %524 = vmatpush2.msra.mxu0 0.0
      %525 = vmatprep.subr.mxu0 0.0
      %526 = vmatpush2.msra.mxu0 0.0
      %527 = vmatprep.subr.mxu0 0.0
      %528 = vmatpush2.msra.mxu0 0.0
      %529 = vmatprep.subr.mxu0 0.0
      %530 = vmatpush2.msra.mxu0 0.0
      %531 = vmatprep.subr.mxu0 0.0
      %532 = vmatpush2.msra.mxu0 0.0
      %533 = vmatprep.subr.mxu0 0.0
      %534 = vmatpush2.msra.mxu0 0.0
      %535 = vmatprep.subr.mxu0 0.0
      %536 = vmatpush2.msra.mxu0 0.0
      %537 = vmatprep.subr.mxu0 0.0
      %538 = vmatpush2.msra.mxu0 0.0
      %539 = vmatprep.subr.mxu0 0.0
      %540 = vmatpush2.msra.mxu0 0.0
      %541 = vmatprep.subr.mxu0 0.0
      %542 = vmatpush2.msra.mxu0 0.0
      %543 = vmatprep.subr.mxu0 0.0
      %544 = vmatpush2.msra.mxu0 0.0
      %545 = vmatprep.subr.mxu0 0.0
      %546 = vmatpush2.msra.mxu0 0.0
      %547 = vmatprep.subr.mxu0 0.0
      %548 = vmatpush2.msra.mxu0 0.0
      %549 = vmatprep.mubr.f32.mxu0 0.0
      %550 = vmatmul.mubr.f32.gmra.mxu0 %v398
      %v551 = vpop.f32.mrf.mxu0
      %v552 = vadd.f32 %v468, %v551
      %v553 = vpop.f32.mrf.mxu0
      %v554 = vadd.f32 %v472, %v553
      %555 = vdwg.mxu0
      %556 = vmatprep.subr.mxu0 %v462
      %557 = vmatpush1.msra.mxu0 %v461
      %558 = vmatprep.subr.mxu0 %v458
      %559 = vmatpush1.msra.mxu0 %v457
      %560 = vmatprep.subr.mxu0 %v454
      %561 = vmatpush1.msra.mxu0 %v453
      %562 = vmatprep.subr.mxu0 %v450
      %563 = vmatpush1.msra.mxu0 %v449
      %564 = vmatprep.subr.mxu0 %v446
      %565 = vmatpush1.msra.mxu0 %v445
      %566 = vmatprep.subr.mxu0 %v442
      %567 = vmatpush1.msra.mxu0 %v441
      %568 = vmatprep.subr.mxu0 %v438
      %569 = vmatpush1.msra.mxu0 %v437
      %570 = vmatprep.subr.mxu0 %v434
      %571 = vmatpush1.msra.mxu0 %v433
      %572 = vmatprep.subr.mxu0 %v430
      %573 = vmatpush1.msra.mxu0 %v429
      %574 = vmatprep.subr.mxu0 %v426
      %575 = vmatpush1.msra.mxu0 %v425
      %576 = vmatprep.subr.mxu0 %v422
      %577 = vmatpush1.msra.mxu0 %v421
      %578 = vmatprep.subr.mxu0 %v418
      %579 = vmatpush1.msra.mxu0 %v417
      %580 = vmatprep.subr.mxu0 %v414
      %581 = vmatpush1.msra.mxu0 %v413
      %582 = vmatprep.subr.mxu0 %v410
      %583 = vmatpush1.msra.mxu0 %v409
      %584 = vmatprep.subr.mxu0 %v406
      %585 = vmatpush1.msra.mxu0 %v405
      %586 = vmatprep.subr.mxu0 %v402
      %587 = vmatpush1.msra.mxu0 %v401
      %588 = vmatprep.subr.mxu0 0.0
      %589 = vmatpush2.msra.mxu0 0.0
      %590 = vmatprep.subr.mxu0 0.0
      %591 = vmatpush2.msra.mxu0 0.0
      %592 = vmatprep.subr.mxu0 0.0
      %593 = vmatpush2.msra.mxu0 0.0
      %594 = vmatprep.subr.mxu0 0.0
      %595 = vmatpush2.msra.mxu0 0.0
      %596 = vmatprep.subr.mxu0 0.0
      %597 = vmatpush2.msra.mxu0 0.0
      %598 = vmatprep.subr.mxu0 0.0
      %599 = vmatpush2.msra.mxu0 0.0
      %600 = vmatprep.subr.mxu0 0.0
      %601 = vmatpush2.msra.mxu0 0.0
      %602 = vmatprep.subr.mxu0 0.0
      %603 = vmatpush2.msra.mxu0 0.0
      %604 = vmatprep.subr.mxu0 0.0
      %605 = vmatpush2.msra.mxu0 0.0
      %606 = vmatprep.subr.mxu0 0.0
      %607 = vmatpush2.msra.mxu0 0.0
      %608 = vmatprep.subr.mxu0 0.0
      %609 = vmatpush2.msra.mxu0 0.0
      %610 = vmatprep.subr.mxu0 0.0
      %611 = vmatpush2.msra.mxu0 0.0
      %612 = vmatprep.subr.mxu0 0.0
      %613 = vmatpush2.msra.mxu0 0.0
      %614 = vmatprep.subr.mxu0 0.0
      %615 = vmatpush2.msra.mxu0 0.0
      %616 = vmatprep.subr.mxu0 0.0
      %617 = vmatpush2.msra.mxu0 0.0
      %618 = vmatprep.subr.mxu0 0.0
      %619 = vmatpush2.msra.mxu0 0.0
      %620 = vmatprep.mubr.f32.mxu0 0.0
      %621 = vmatmul.mubr.f32.gmra.mxu0 %v398
      %v622 = vpop.f32.mrf.mxu0
      %v623 = vadd.f32 %v476, %v622
      %v624 = vpop.f32.mrf.mxu0
      %v625 = vadd.f32 %v480, %v624
      %626 = vdwg.mxu0
      %v627 = vmul.f32 %v552, 0.5
      %v628 = vmul.f32 %v554, 0.5
      %v629 = vmul.f32 %v623, 0.5
      %v630 = vmul.f32 %v625, 0.5
      %v631 = vmul.f32 %v552, 0.70710677
      %v632 = vmul.f32 %v554, 0.70710677
      %v633 = vmul.f32 %v623, 0.70710677
      %v634 = vmul.f32 %v625, 0.70710677
      %v635 = verf.f32.pop %v631
      %v636 = verf.f32.pop %v632
      %v637 = verf.f32.pop %v633
      %v638 = verf.f32.pop %v634
      %v639 = vadd.f32 %v635, 1.0
      %v640 = vadd.f32 %v636, 1.0
      %v641 = vadd.f32 %v637, 1.0
      %v642 = vadd.f32 %v638, 1.0
      %v643 = vmul.f32 %v627, %v639
      %v644 = vmul.f32 %v628, %v640
      %v645 = vmul.f32 %v629, %v641
      %v646 = vmul.f32 %v630, %v642
      %v647 = vld [vmem:[#allocation2] sm:$0xff]
      %v648 = vld [vmem:[%s383] sm:$0xff]
      %v649 = vld [vmem:[%s383 + $0x8] sm:$0xff]
      %v650 = vld [vmem:[%s383 + $0x10] sm:$0xff]
      %v651 = vld [vmem:[%s383 + $0x18] sm:$0xff]
      %v652 = vld [vmem:[%s383 + $0x20] sm:$0xff]
      %v653 = vld [vmem:[%s383 + $0x28] sm:$0xff]
      %v654 = vld [vmem:[%s383 + $0x30] sm:$0xff]
      %v655 = vld [vmem:[%s383 + $0x38] sm:$0xff]
      %v656 = vld [vmem:[%s383 + $0x40] sm:$0xff]
      %v657 = vld [vmem:[%s383 + $0x48] sm:$0xff]
      %v658 = vld [vmem:[%s383 + $0x50] sm:$0xff]
      %v659 = vld [vmem:[%s383 + $0x58] sm:$0xff]
      %v660 = vld [vmem:[%s383 + $0x60] sm:$0xff]
      %v661 = vld [vmem:[%s383 + $0x68] sm:$0xff]
      %v662 = vld [vmem:[%s383 + $0x70] sm:$0xff]
      %v663 = vld [vmem:[%s383 + $0x78] sm:$0xff]
      %v664 = vld [vmem:[%s383 + $0x80] sm:$0xff]
      %v665 = vld [vmem:[%s383 + $0x88] sm:$0xff]
      %v666 = vld [vmem:[%s383 + $0x90] sm:$0xff]
      %v667 = vld [vmem:[%s383 + $0x98] sm:$0xff]
      %v668 = vld [vmem:[%s383 + $0xa0] sm:$0xff]
      %v669 = vld [vmem:[%s383 + $0xa8] sm:$0xff]
      %v670 = vld [vmem:[%s383 + $0xb0] sm:$0xff]
      %v671 = vld [vmem:[%s383 + $0xb8] sm:$0xff]
      %v672 = vld [vmem:[%s383 + $0xc0] sm:$0xff]
      %v673 = vld [vmem:[%s383 + $0xc8] sm:$0xff]
      %v674 = vld [vmem:[%s383 + $0xd0] sm:$0xff]
      %v675 = vld [vmem:[%s383 + $0xd8] sm:$0xff]
      %v676 = vld [vmem:[%s383 + $0xe0] sm:$0xff]
      %v677 = vld [vmem:[%s383 + $0xe8] sm:$0xff]
      %v678 = vld [vmem:[%s383 + $0xf0] sm:$0xff]
      %v679 = vld [vmem:[%s383 + $0xf8] sm:$0xff]
      %v680 = vld [vmem:[%s383 + $0x100] sm:$0xff]
      %v681 = vld [vmem:[%s383 + $0x108] sm:$0xff]
      %v682 = vld [vmem:[%s383 + $0x110] sm:$0xff]
      %v683 = vld [vmem:[%s383 + $0x118] sm:$0xff]
      %v684 = vld [vmem:[%s383 + $0x120] sm:$0xff]
      %v685 = vld [vmem:[%s383 + $0x128] sm:$0xff]
      %v686 = vld [vmem:[%s383 + $0x130] sm:$0xff]
      %v687 = vld [vmem:[%s383 + $0x138] sm:$0xff]
      %v688 = vld [vmem:[%s383 + $0x140] sm:$0xff]
      %v689 = vld [vmem:[%s383 + $0x148] sm:$0xff]
      %v690 = vld [vmem:[%s383 + $0x150] sm:$0xff]
      %v691 = vld [vmem:[%s383 + $0x158] sm:$0xff]
      %v692 = vld [vmem:[%s383 + $0x160] sm:$0xff]
      %v693 = vld [vmem:[%s383 + $0x168] sm:$0xff]
      %v694 = vld [vmem:[%s383 + $0x170] sm:$0xff]
      %v695 = vld [vmem:[%s383 + $0x178] sm:$0xff]
      %v696 = vld [vmem:[%s383 + $0x180] sm:$0xff]
      %v697 = vld [vmem:[%s383 + $0x188] sm:$0xff]
      %v698 = vld [vmem:[%s383 + $0x190] sm:$0xff]
      %v699 = vld [vmem:[%s383 + $0x198] sm:$0xff]
      %v700 = vld [vmem:[%s383 + $0x1a0] sm:$0xff]
      %v701 = vld [vmem:[%s383 + $0x1a8] sm:$0xff]
      %v702 = vld [vmem:[%s383 + $0x1b0] sm:$0xff]
      %v703 = vld [vmem:[%s383 + $0x1b8] sm:$0xff]
      %v704 = vld [vmem:[%s383 + $0x1c0] sm:$0xff]
      %v705 = vld [vmem:[%s383 + $0x1c8] sm:$0xff]
      %v706 = vld [vmem:[%s383 + $0x1d0] sm:$0xff]
      %v707 = vld [vmem:[%s383 + $0x1d8] sm:$0xff]
      %v708 = vld [vmem:[%s383 + $0x1e0] sm:$0xff]
      %v709 = vld [vmem:[%s383 + $0x1e8] sm:$0xff]
      %v710 = vld [vmem:[%s383 + $0x1f0] sm:$0xff]
      %v711 = vld [vmem:[%s383 + $0x1f8] sm:$0xff]
      %712 = vmatprep.subr.mxu0 0.0
      %713 = vmatpush1.msra.mxu0 %v663
      %714 = vmatprep.subr.mxu0 0.0
      %715 = vmatpush1.msra.mxu0 %v662
      %716 = vmatprep.subr.mxu0 0.0
      %717 = vmatpush1.msra.mxu0 %v661
      %718 = vmatprep.subr.mxu0 0.0
      %719 = vmatpush1.msra.mxu0 %v660
      %720 = vmatprep.subr.mxu0 0.0
      %721 = vmatpush1.msra.mxu0 %v659
      %722 = vmatprep.subr.mxu0 0.0
      %723 = vmatpush1.msra.mxu0 %v658
      %724 = vmatprep.subr.mxu0 0.0
      %725 = vmatpush1.msra.mxu0 %v657
      %726 = vmatprep.subr.mxu0 0.0
      %727 = vmatpush1.msra.mxu0 %v656
      %728 = vmatprep.subr.mxu0 0.0
      %729 = vmatpush1.msra.mxu0 %v655
      %730 = vmatprep.subr.mxu0 0.0
      %731 = vmatpush1.msra.mxu0 %v654
      %732 = vmatprep.subr.mxu0 0.0
      %733 = vmatpush1.msra.mxu0 %v653
      %734 = vmatprep.subr.mxu0 0.0
      %735 = vmatpush1.msra.mxu0 %v652
      %736 = vmatprep.subr.mxu0 0.0
      %737 = vmatpush1.msra.mxu0 %v651
      %738 = vmatprep.subr.mxu0 0.0
      %739 = vmatpush1.msra.mxu0 %v650
      %740 = vmatprep.subr.mxu0 0.0
      %741 = vmatpush1.msra.mxu0 %v649
      %742 = vmatprep.subr.mxu0 0.0
      %743 = vmatpush1.msra.mxu0 %v648
      %744 = vmatprep.subr.mxu0 0.0
      %745 = vmatpush2.msra.mxu0 %v679
      %746 = vmatprep.subr.mxu0 0.0
      %747 = vmatpush2.msra.mxu0 %v678
      %748 = vmatprep.subr.mxu0 0.0
      %749 = vmatpush2.msra.mxu0 %v677
      %750 = vmatprep.subr.mxu0 0.0
      %751 = vmatpush2.msra.mxu0 %v676
      %752 = vmatprep.subr.mxu0 0.0
      %753 = vmatpush2.msra.mxu0 %v675
      %754 = vmatprep.subr.mxu0 0.0
      %755 = vmatpush2.msra.mxu0 %v674
      %756 = vmatprep.subr.mxu0 0.0
      %757 = vmatpush2.msra.mxu0 %v673
      %758 = vmatprep.subr.mxu0 0.0
      %759 = vmatpush2.msra.mxu0 %v672
      %760 = vmatprep.subr.mxu0 0.0
      %761 = vmatpush2.msra.mxu0 %v671
      %762 = vmatprep.subr.mxu0 0.0
      %763 = vmatpush2.msra.mxu0 %v670
      %764 = vmatprep.subr.mxu0 0.0
      %765 = vmatpush2.msra.mxu0 %v669
      %766 = vmatprep.subr.mxu0 0.0
      %767 = vmatpush2.msra.mxu0 %v668
      %768 = vmatprep.subr.mxu0 0.0
      %769 = vmatpush2.msra.mxu0 %v667
      %770 = vmatprep.subr.mxu0 0.0
      %771 = vmatpush2.msra.mxu0 %v666
      %772 = vmatprep.subr.mxu0 0.0
      %773 = vmatpush2.msra.mxu0 %v665
      %774 = vmatprep.subr.mxu0 0.0
      %775 = vmatpush2.msra.mxu0 %v664
      %776 = vmatprep.mubr.f32.mxu0 %v644
      %777 = vmatmul.mubr.f32.gmra.mxu0 %v643
      %v778 = vpop.f32.mrf.mxu0
      %v779 = vadd.f32 0.0, %v778
      %v780 = vpop.f32.mrf.mxu0
      %781 = vdwg.mxu0
      %782 = vmatprep.subr.mxu0 0.0
      %783 = vmatpush1.msra.mxu0 %v695
      %784 = vmatprep.subr.mxu0 0.0
      %785 = vmatpush1.msra.mxu0 %v694
      %786 = vmatprep.subr.mxu0 0.0
      %787 = vmatpush1.msra.mxu0 %v693
      %788 = vmatprep.subr.mxu0 0.0
      %789 = vmatpush1.msra.mxu0 %v692
      %790 = vmatprep.subr.mxu0 0.0
      %791 = vmatpush1.msra.mxu0 %v691
      %792 = vmatprep.subr.mxu0 0.0
      %793 = vmatpush1.msra.mxu0 %v690
      %794 = vmatprep.subr.mxu0 0.0
      %795 = vmatpush1.msra.mxu0 %v689
      %796 = vmatprep.subr.mxu0 0.0
      %797 = vmatpush1.msra.mxu0 %v688
      %798 = vmatprep.subr.mxu0 0.0
      %799 = vmatpush1.msra.mxu0 %v687
      %800 = vmatprep.subr.mxu0 0.0
      %801 = vmatpush1.msra.mxu0 %v686
      %802 = vmatprep.subr.mxu0 0.0
      %803 = vmatpush1.msra.mxu0 %v685
      %804 = vmatprep.subr.mxu0 0.0
      %805 = vmatpush1.msra.mxu0 %v684
      %806 = vmatprep.subr.mxu0 0.0
      %807 = vmatpush1.msra.mxu0 %v683
      %808 = vmatprep.subr.mxu0 0.0
      %809 = vmatpush1.msra.mxu0 %v682
      %810 = vmatprep.subr.mxu0 0.0
      %811 = vmatpush1.msra.mxu0 %v681
      %812 = vmatprep.subr.mxu0 0.0
      %813 = vmatpush1.msra.mxu0 %v680
      %814 = vmatprep.subr.mxu0 0.0
      %815 = vmatpush2.msra.mxu0 %v711
      %816 = vmatprep.subr.mxu0 0.0
      %817 = vmatpush2.msra.mxu0 %v710
      %818 = vmatprep.subr.mxu0 0.0
      %819 = vmatpush2.msra.mxu0 %v709
      %820 = vmatprep.subr.mxu0 0.0
      %821 = vmatpush2.msra.mxu0 %v708
      %822 = vmatprep.subr.mxu0 0.0
      %823 = vmatpush2.msra.mxu0 %v707
      %824 = vmatprep.subr.mxu0 0.0
      %825 = vmatpush2.msra.mxu0 %v706
      %826 = vmatprep.subr.mxu0 0.0
      %827 = vmatpush2.msra.mxu0 %v705
      %828 = vmatprep.subr.mxu0 0.0
      %829 = vmatpush2.msra.mxu0 %v704
      %830 = vmatprep.subr.mxu0 0.0
      %831 = vmatpush2.msra.mxu0 %v703
      %832 = vmatprep.subr.mxu0 0.0
      %833 = vmatpush2.msra.mxu0 %v702
      %834 = vmatprep.subr.mxu0 0.0
      %835 = vmatpush2.msra.mxu0 %v701
      %836 = vmatprep.subr.mxu0 0.0
      %837 = vmatpush2.msra.mxu0 %v700
      %838 = vmatprep.subr.mxu0 0.0
      %839 = vmatpush2.msra.mxu0 %v699
      %840 = vmatprep.subr.mxu0 0.0
      %841 = vmatpush2.msra.mxu0 %v698
      %842 = vmatprep.subr.mxu0 0.0
      %843 = vmatpush2.msra.mxu0 %v697
      %844 = vmatprep.subr.mxu0 0.0
      %845 = vmatpush2.msra.mxu0 %v696
      %846 = vmatprep.mubr.f32.mxu0 %v646
      %847 = vmatmul.mubr.f32.gmra.mxu0 %v645
      %v848 = vpop.f32.mrf.mxu0
      %v849 = vadd.f32 %v779, %v848
      %v850 = vpop.f32.mrf.mxu0
      %851 = vdwg.mxu0
      %v852 = vadd.f32 %v647, %v849
      %853 = vst [vmem:[#allocation2] sm:$0xff] %v852
      // Predicated region
      $region57: #{bert_encoder_ffn_tucker_forward.2} parent=51 // pred_check
        %p854 = pneg %p393
      $region58: #{bert_encoder_ffn_tucker_forward.2} parent=51 // pred_check_branch
        %856 = sbr.rel (%p854) target = $region60
      $region59: #{bert_encoder_ffn_tucker_forward.2} parent=51 // pred_region
        %v857 = vld [vmem:[#allocation2] sm:$0xff]
        %v858 = vld [vmem:[%s4] sm:$0x1]
        %v860 = vlaneseq
        %v861 = vshrl.u32 %v860, 7
        %v862 = vsub.s32 0, %v861
        %v863 = vrot.slane %v858, %v862
        %v865 = vadd.f32 %v857, %v863
        %v866 = vld [vmem:[%s388] sm:$0xff]
        %v867 = vadd.f32 %v865, %v866
        %868 = vadd.xlane.f32.xlu0 %v867
        %v869 = vpop.xlane.xlu0 %868
        %v870 = vmul.f32 %v867, %v867
        %871 = vadd.xlane.f32.xlu0 %v870
        %v872 = vpop.xlane.xlu0 %871
        %v873 = vmul.f32 %v869, 0.0078125
        %v874 = vmul.f32 %v872, 0.0078125
        %v875 = vmul.f32 %v873, %v873
        %v876 = vsub.f32 %v874, %v875
        %v877 = vmax.f32 %v876, 0.0
        %v878 = vadd.f32 %v877, 1e-12
        %v879 = vrsqrt.pop %v878
        %v880 = vsub.f32 %v867, %v873
        %v881 = vmul.f32 %v880, %v879
        %v882 = vld [vmem:[%s6] sm:$0x1]
        %v884 = vlaneseq
        %v885 = vshrl.u32 %v884, 7
        %v886 = vsub.s32 0, %v885
        %v887 = vrot.slane %v882, %v886
        %v889 = vmul.f32 %v881, %v887
        %v890 = vld [vmem:[%s7] sm:$0x1]
        %v892 = vlaneseq
        %v893 = vshrl.u32 %v892, 7
        %v894 = vsub.s32 0, %v893
        %v895 = vrot.slane %v890, %v894
        %v897 = vadd.f32 %v889, %v895
        %898 = vst [vmem:[%s392] sm:$0xff] %v897
      $region60: #{bert_encoder_ffn_tucker_forward.2} parent=51 // pred_fallthru
        _
      %p899 = scmp.lt.s32.totalorder %s23, 1
      %s900 = scalar_select %p899, %s23, 1
      %s901 = smul.addr %s900, 8
      %s902 = scalar_lea.vmem %s8, %s901
      // Predicated region
      $region61: #{bert_encoder_ffn_tucker_forward.2} parent=51 // pred_check
        %p903 = pneg %p242
      $region62: #{bert_encoder_ffn_tucker_forward.2} parent=51 // pred_check_branch
        %905 = sbr.rel (%p903) target = $region64
      $region63: #{bert_encoder_ffn_tucker_forward.2} parent=51 // pred_region
        _
      $region64: #{bert_encoder_ffn_tucker_forward.2} parent=51 // pred_fallthru
        _
    $region52: #{bert_encoder_ffn_tucker_forward.2} parent=5 // pred_fallthru
      _
    %p906 = scmp.le.s32.totalorder 2, %s14
    // Predicated region
    $region65: #{bert_encoder_ffn_tucker_forward.2} parent=5 // pred_check
      %p907 = pneg %p906
    $region66: #{bert_encoder_ffn_tucker_forward.2} parent=5 // pred_check_branch
      %909 = sbr.rel (%p907) target = $region68
    $region67: #{bert_encoder_ffn_tucker_forward.2} parent=5 // pred_region
      %s910 = ssub.s32 %s14, 2
      // Predicated region
      $region69: #{bert_encoder_ffn_tucker_forward.2} parent=67 // pred_check
        %p911 = pneg %p248
      $region70: #{bert_encoder_ffn_tucker_forward.2} parent=67 // pred_check_branch
        %913 = sbr.rel (%p911) target = $region72
      $region71: #{bert_encoder_ffn_tucker_forward.2} parent=67 // pred_region
        %p914 = scmp.lt.s32.totalorder %s25, 1
        %s915 = scalar_select %p914, %s25, 1
        %s916 = smul.addr %s915, 8
        %s917 = scalar_lea.vmem %s8, %s916
      $region72: #{bert_encoder_ffn_tucker_forward.2} parent=67 // pred_fallthru
        _
    $region68: #{bert_encoder_ffn_tucker_forward.2} parent=5 // pred_fallthru
      _
  $region6: #{bert_encoder_ffn_tucker_forward.2} parent=0 // loop_footer
    %s18 = sadd.s32 1, %s14
  $region7: #{bert_encoder_ffn_tucker_forward.2} parent=0 // loop_footer_branch
    %13 = sbr.rel target = $region3
  $region8: #{bert_encoder_ffn_tucker_forward.2} parent=0 // loop_exit
    _

</llo_original>
